<compile_context>
chip_gen: v5e
topology: v5e:2x2
jax: 0.10.0
libtpu: 0.0.40
codegen_flags: <defaults>
</compile_context>

<pallas_src>
import functools

import jax
import jax.numpy as jnp
from jax import lax
from jax.experimental import pallas as pl
from jax.experimental.pallas import tpu as pltpu


# ----------------------------------------------------------------------------
# Pallas kernel: one batch element per grid step.
# ----------------------------------------------------------------------------
def _coupling_kernel(x_ref, mask_ref, ws_ref, bs_ref, win_ref, bin_ref,
                     wrs_ref, brs_ref, we_ref, be_ref,
                     z_ref, ld_ref,
                     hpad_ref, stk_ref,
                     *, C, H, K, T, L, dilation_rate, p_max, sigmoid_scale,
                     mxu_dtype):
    f32 = jnp.float32
    C2 = C // 2

    xb = x_ref[0]                        # (C, T)   channels=sublane, time=lane
    mask = mask_ref[0]                   # (1, T)
    x0 = xb[:C2, :]                      # (C/2, T)
    x1 = xb[C2:, :]                      # (C/2, T)

    # start: 1x1 conv  (H, C/2) @ (C/2, T)   (weights already in mxu_dtype)
    h = (jnp.dot(ws_ref[...], x0.astype(mxu_dtype),
                 preferred_element_type=f32) + bs_ref[...]) * mask   # (H, T) f32

    # Zero the dilation halo of the padded scratch.  Borders only — the centre
    # is rewritten every layer.  Done every grid step because the scratch
    # starts uninitialised and grid steps may be sharded across cores.
    if p_max > 0:
        hpad_ref[:, :p_max] = jnp.zeros((H, p_max), mxu_dtype)
        hpad_ref[:, p_max + T:] = jnp.zeros((H, p_max), mxu_dtype)

    output = jnp.zeros((H, T), f32)
    for i in range(L):                   # static unroll; L is small
        d = dilation_rate ** i
        p = (K * d - d) // 2
        hpad_ref[:, p_max:p_max + T] = h.astype(mxu_dtype)
        # Stack the K dilated taps along sublanes -> (K*H, T) so the dilated
        # conv becomes a single MXU matmul with contraction K*H.
        for j in range(K):
            off = p_max - p + j * d      # static offset, stays in bounds
            stk_ref[j * H:(j + 1) * H, :] = hpad_ref[:, off:off + T]
        x_in = (jnp.dot(win_ref[i], stk_ref[...],
                        preferred_element_type=f32) + bin_ref[i])    # (2H, T)
        # fused_add_tanh_sigmoid_multiply with g = None (g_l == 0)
        acts = jnp.tanh(x_in[:H, :]) * jax.nn.sigmoid(x_in[H:, :])   # (H, T)
        acts_c = acts.astype(mxu_dtype)
        if i < L - 1:
            rs = (jnp.dot(wrs_ref[i], acts_c,
                          preferred_element_type=f32) + brs_ref[i])  # (2H, T)
            h = (h + rs[:H, :]) * mask
            output = output + rs[H:, :]
        else:
            # Last layer has only H skip channels: (H, H) matmul only —
            # never multiply by the zero-padded res half.
            skip = (jnp.dot(wrs_ref[i, H:, :], acts_c,
                            preferred_element_type=f32)
                    + brs_ref[i, H:, :])                             # (H, T)
            output = output + skip
    output = output * mask

    # end: 1x1 conv  (C, H) @ (H, T)
    out = (jnp.dot(we_ref[...], output.astype(mxu_dtype),
                   preferred_element_type=f32) + be_ref[...])        # (C, T)
    m = out[:C2, :]
    logs = out[C2:, :]
    if sigmoid_scale:
        logs = jnp.log(1e-6 + jax.nn.sigmoid(logs + 2.0))
    logs_m = logs * mask

    # In-place half writes (no channel concatenate).
    z_ref[0, :C2, :] = x0
    z_ref[0, C2:, :] = (m + jnp.exp(logs) * x1) * mask
    # Lane-dense partial logdet: reduce channels here, reduce time outside.
    ld_ref[0] = jnp.sum(logs_m, axis=0, keepdims=True)               # (1, T)


def coupling_block_forward(x, x_mask, params, *, kernel_size, dilation_rate,
                           num_layers, sigmoid_scale=False,
                           mxu_dtype=jnp.float32):
    """x: (B, C, T) f32; x_mask: (B, 1, T) f32. Returns (z, logdet)."""
    B, C, T_in = x.shape
    H = params["w_start"].shape[0]
    K, L = kernel_size, num_layers
    d_max = dilation_rate ** (L - 1)
    p_max = (K * d_max - d_max) // 2

    # Pad the time axis to a lane-dense multiple of 128 (mask handles the tail).
    T = ((T_in + 127) // 128) * 128
    if T != T_in:
        x = jnp.pad(x, ((0, 0), (0, 0), (0, T - T_in)))
        x_mask = jnp.pad(x_mask, ((0, 0), (0, 0), (0, T - T_in)))

    # Pre-cast matmul weights once in the wrapper (biases stay f32 for the
    # f32-accumulated adds) — no per-grid-step weight casting on the VPU.
    w_start = params["w_start"].astype(mxu_dtype)
    w_in = params["w_in"].astype(mxu_dtype)
    w_rs = params["w_rs"].astype(mxu_dtype)
    w_end = params["w_end"].astype(mxu_dtype)

    args = (x, x_mask,
            w_start, params["b_start"],
            w_in, params["b_in"],
            w_rs, params["b_rs"],
            w_end, params["b_end"])

    def _const(a):
        n = a.ndim
        return pl.BlockSpec(a.shape, lambda b, n=n: (0,) * n)

    in_specs = [
        pl.BlockSpec((1, C, T), lambda b: (b, 0, 0)),      # x   : one batch/step
        pl.BlockSpec((1, 1, T), lambda b: (b, 0, 0)),      # mask
        _const(w_start), _const(params["b_start"]),
        _const(w_in), _const(params["b_in"]),
        _const(w_rs), _const(params["b_rs"]),
        _const(w_end), _const(params["b_end"]),
    ]
    out_specs = (pl.BlockSpec((1, C, T), lambda b: (b, 0, 0)),   # z
                 pl.BlockSpec((1, 1, T), lambda b: (b, 0, 0)))   # logdet partial
    out_shape = (jax.ShapeDtypeStruct((B, C, T), jnp.float32),
                 jax.ShapeDtypeStruct((B, 1, T), jnp.float32))

    kernel = functools.partial(
        _coupling_kernel, C=C, H=H, K=K, T=T, L=L,
        dilation_rate=dilation_rate, p_max=p_max,
        sigmoid_scale=sigmoid_scale, mxu_dtype=mxu_dtype)

    grid_spec = pltpu.PrefetchScalarGridSpec(
        num_scalar_prefetch=0,
        grid=(B,),
        in_specs=in_specs,
        out_specs=out_specs,
        scratch_shapes=[
            pltpu.VMEM((H, T + 2 * p_max), mxu_dtype),   # zero-haloed h
            pltpu.VMEM((K * H, T), mxu_dtype),           # stacked dilation taps
        ])

    z_pad, ld_pad = pl.pallas_call(
        kernel,
        grid_spec=grid_spec,
        out_shape=out_shape,
        compiler_params=pltpu.CompilerParams(
            dimension_semantics=("parallel",)),   # megacore: split batches
    )(*args)

    z = z_pad[:, :, :T_in]
    logdet = jnp.sum(ld_pad[:, 0, :], axis=-1)
    return z, logdet


# ----------------------------------------------------------------------------
# Deterministic parameter construction (shapes follow the PyTorch __init__).
# ----------------------------------------------------------------------------
def init_params(key, in_channels, hidden_channels, kernel_size, num_layers):
    C, H, K, L = in_channels, hidden_channels, kernel_size, num_layers
    C2 = C // 2
    keys = jax.random.split(key, 4 + 4 * L)

    def nrm(k, shape, scale=0.1):
        return scale * jax.random.normal(k, shape, jnp.float32)

    raw = {
        "w_start": nrm(keys[0], (H, C2, 1)),
        "b_start": nrm(keys[1], (H,)),
        "w_in": [], "b_in": [], "w_rs": [], "b_rs": [],
    }
    for i in range(L):
        raw["w_in"].append(nrm(keys[2 + 4 * i], (2 * H, H, K)))
        raw["b_in"].append(nrm(keys[3 + 4 * i], (2 * H,)))
        rs_ch = 2 * H if i < L - 1 else H
        raw["w_rs"].append(nrm(keys[4 + 4 * i], (rs_ch, H, 1)))
        raw["b_rs"].append(nrm(keys[5 + 4 * i], (rs_ch,)))
    # PyTorch zero-inits `end`; use small nonzero values so the test is
    # meaningful (set scale=0.0 to reproduce the literal zero init).
    raw["w_end"] = nrm(keys[-2], (C, H, 1), scale=0.05)
    raw["b_end"] = nrm(keys[-1], (C,), scale=0.05)
    return raw


def pack_params(raw, H, K, L):
    """Repack per-layer conv weights into stacked, kernel-friendly tensors."""
    p = {
        "w_start": raw["w_start"][:, :, 0],          # (H, C/2)
        "b_start": raw["b_start"][:, None],          # (H, 1)
        "w_end": raw["w_end"][:, :, 0],              # (C, H)
        "b_end": raw["b_end"][:, None],              # (C, 1)
    }
    # dilated conv weights: (2H, H, K) -> (2H, K*H), tap-major blocks so the
    # stacked (K*H, T) operand in the kernel contracts correctly.
    p["w_in"] = jnp.stack(
        [jnp.transpose(w, (0, 2, 1)).reshape(2 * H, K * H)
         for w in raw["w_in"]], 0)                   # (L, 2H, K*H)
    p["b_in"] = jnp.stack([b[:, None] for b in raw["b_in"]], 0)  # (L, 2H, 1)
    wrs, brs = [], []
    for i in range(L):
        w = raw["w_rs"][i][:, :, 0]
        b = raw["b_rs"][i]
        if i == L - 1:
            # last layer: only H skip channels -> keep them in the skip half;
            # the zero res half is never touched by the kernel.
            w = jnp.concatenate([jnp.zeros((H, H), jnp.float32), w], axis=0)
            b = jnp.concatenate([jnp.zeros((H,), jnp.float32), b], axis=0)
        wrs.append(w)
        brs.append(b[:, None])
    p["w_rs"] = jnp.stack(wrs, 0)                    # (L, 2H, H)
    p["b_rs"] = jnp.stack(brs, 0)                    # (L, 2H, 1)
    return p


# ----------------------------------------------------------------------------
# Pure-JAX reference (mirrors the PyTorch code with lax conv), for validation.
# ----------------------------------------------------------------------------
def _conv1d(x, w, b, dilation=1, padding=0):
    y = lax.conv_general_dilated(x, w, window_strides=(1,),
                                 padding=[(padding, padding)],
                                 rhs_dilation=(dilation,),
                                 dimension_numbers=("NCH", "OIH", "NCH"))
    return y + b[None, :, None]


def reference_forward(x, x_mask, raw, *, kernel_size, dilation_rate,
                      num_layers, sigmoid_scale=False):
    C = x.shape[1]
    C2 = C // 2
    H = raw["w_start"].shape[0]
    x0, x1 = x[:, :C2], x[:, C2:]
    h = _conv1d(x0, raw["w_start"], raw["b_start"]) * x_mask
    output = jnp.zeros_like(h)
    for i in range(num_layers):
        d = dilation_rate ** i
        p = (kernel_size * d - d) // 2
        x_in = _conv1d(h, raw["w_in"][i], raw["b_in"][i], dilation=d, padding=p)
        acts = jnp.tanh(x_in[:, :H]) * jax.nn.sigmoid(x_in[:, H:])
        rs = _conv1d(acts, raw["w_rs"][i], raw["b_rs"][i])
        if i < num_layers - 1:
            h = (h + rs[:, :H]) * x_mask
            output = output + rs[:, H:]
        else:
            output = output + rs
    output = output * x_mask
    out = _conv1d(output, raw["w_end"], raw["b_end"])
    m, logs = out[:, :C2], out[:, C2:]
    if sigmoid_scale:
        logs = jnp.log(1e-6 + jax.nn.sigmoid(logs + 2.0))
    z1 = (m + jnp.exp(logs) * x1) * x_mask
    z = jnp.concatenate([x0, z1], axis=1)
    logdet = jnp.sum(logs * x_mask, axis=(1, 2))
    return z, logdet


# ----------------------------------------------------------------------------
if __name__ == "__main__":
    B, C, H, K, DIL, L, T = 2, 4, 32, 3, 2, 4, 16
    SIGMOID_SCALE = False

    key = jax.random.PRNGKey(0)
    kx, kp = jax.random.split(key)
    x = jax.random.normal(kx, (B, C, T), jnp.float32)
    lengths = jnp.array([T, T - 4])
    x_mask = (jnp.arange(T)[None, None, :]
              < lengths[:, None, None]).astype(jnp.float32)   # (B, 1, T)

    raw = init_params(kp, C, H, K, L)
    packed = pack_params(raw, H, K, L)

    # mxu_dtype=jnp.bfloat16 is recommended for production on v6e/v7x (f32
    # accumulation is kept); f32 here so the check against the reference is tight.
    z, logdet = coupling_block_forward(
        x, x_mask, packed, kernel_size=K, dilation_rate=DIL,
        num_layers=L, sigmoid_scale=SIGMOID_SCALE, mxu_dtype=jnp.float32)
    z = jax.block_until_ready(z)
    logdet = jax.block_until_ready(logdet)

    z_ref, ld_ref = reference_forward(
        x, x_mask, raw, kernel_size=K, dilation_rate=DIL,
        num_layers=L, sigmoid_scale=SIGMOID_SCALE)

    assert z.shape == (B, C, T) and logdet.shape == (B,)
    assert jnp.allclose(z, z_ref, atol=1e-4, rtol=1e-4), "z mismatch"
    assert jnp.allclose(logdet, ld_ref, atol=1e-4, rtol=1e-4), "logdet mismatch"
    print("KERNEL_OK")
</pallas_src>

<mosaic_0001>
module attributes {stable_mosaic.version = 11 : i64} {
  func.func @_coupling_kernel(%arg0: i32, %arg1: memref<1x4x128xf32, #tpu.memory_space<vmem>>, %arg2: memref<1x1x128xf32, #tpu.memory_space<vmem>>, %arg3: memref<32x2xf32, #tpu.memory_space<vmem>>, %arg4: memref<32x1xf32, #tpu.memory_space<vmem>>, %arg5: memref<4x64x96xf32, #tpu.memory_space<vmem>>, %arg6: memref<4x64x1xf32, #tpu.memory_space<vmem>>, %arg7: memref<4x64x32xf32, #tpu.memory_space<vmem>>, %arg8: memref<4x64x1xf32, #tpu.memory_space<vmem>>, %arg9: memref<4x32xf32, #tpu.memory_space<vmem>>, %arg10: memref<4x1xf32, #tpu.memory_space<vmem>>, %arg11: memref<1x4x128xf32, #tpu.memory_space<vmem>>, %arg12: memref<1x1x128xf32, #tpu.memory_space<vmem>>, %arg13: memref<32x144xf32, #tpu.memory_space<vmem>>, %arg14: memref<96x128xf32, #tpu.memory_space<vmem>>) attributes {dimension_semantics = [#tpu.dimension_semantics<parallel>], iteration_bounds = array<i64: 2>, scalar_prefetch = 0 : i64, scratch_operands = 2 : i64, tpu.core_type = #tpu.core_type<tc>, window_params = [{transform_indices = @transform_0, window_bounds = array<i64: 1, 4, 128>}, {transform_indices = @transform_1, window_bounds = array<i64: 1, 1, 128>}, {pipeline_mode = #tpu.pipeline_mode<synchronous>, transform_indices = @transform_2, window_bounds = array<i64: 32, 2>}, {pipeline_mode = #tpu.pipeline_mode<synchronous>, transform_indices = @transform_3, window_bounds = array<i64: 32, 1>}, {pipeline_mode = #tpu.pipeline_mode<synchronous>, transform_indices = @transform_4, window_bounds = array<i64: 4, 64, 96>}, {pipeline_mode = #tpu.pipeline_mode<synchronous>, transform_indices = @transform_5, window_bounds = array<i64: 4, 64, 1>}, {pipeline_mode = #tpu.pipeline_mode<synchronous>, transform_indices = @transform_6, window_bounds = array<i64: 4, 64, 32>}, {pipeline_mode = #tpu.pipeline_mode<synchronous>, transform_indices = @transform_7, window_bounds = array<i64: 4, 64, 1>}, {pipeline_mode = #tpu.pipeline_mode<synchronous>, transform_indices = @transform_8, window_bounds = array<i64: 4, 32>}, {pipeline_mode = #tpu.pipeline_mode<synchronous>, transform_indices = @transform_9, window_bounds = array<i64: 4, 1>}, {transform_indices = @transform_10, window_bounds = array<i64: 1, 4, 128>}, {transform_indices = @transform_11, window_bounds = array<i64: 1, 1, 128>}]} {
    %c0 = arith.constant 0 : index
    %c0_0 = arith.constant 0 : index
    %c0_1 = arith.constant 0 : index
    %0 = vector.load %arg1[%c0, %c0_0, %c0_1] : memref<1x4x128xf32, #tpu.memory_space<vmem>>, vector<1x4x128xf32>
    %1 = vector.shape_cast %0 : vector<1x4x128xf32> to vector<4x128xf32>
    %c0_2 = arith.constant 0 : index
    %c0_3 = arith.constant 0 : index
    %c0_4 = arith.constant 0 : index
    %2 = vector.load %arg2[%c0_2, %c0_3, %c0_4] : memref<1x1x128xf32, #tpu.memory_space<vmem>>, vector<1x1x128xf32>
    %3 = vector.shape_cast %2 : vector<1x1x128xf32> to vector<1x128xf32>
    %4 = vector.extract_strided_slice %1 {offsets = [0, 0], sizes = [2, 128], strides = [1, 1]} : vector<4x128xf32> to vector<2x128xf32>
    %5 = vector.extract_strided_slice %1 {offsets = [2, 0], sizes = [2, 128], strides = [1, 1]} : vector<4x128xf32> to vector<2x128xf32>
    %c0_5 = arith.constant 0 : index
    %c0_6 = arith.constant 0 : index
    %6 = vector.load %arg3[%c0_5, %c0_6] : memref<32x2xf32, #tpu.memory_space<vmem>>, vector<32x2xf32>
    %cst = arith.constant dense<0.000000e+00> : vector<32x128xf32>
    %7 = tpu.matmul %6, %4, %cst {dimension_numbers = #tpu.dot_dimension_numbers<[1], [0], [0], [1], [0, 0, 1, 1], [], []>} : vector<32x2xf32>, vector<2x128xf32>, vector<32x128xf32> -> vector<32x128xf32>
    %c0_7 = arith.constant 0 : index
    %c0_8 = arith.constant 0 : index
    %8 = vector.load %arg4[%c0_7, %c0_8] : memref<32x1xf32, #tpu.memory_space<vmem>>, vector<32x1xf32>
    %9 = vector.broadcast %8 : vector<32x1xf32> to vector<32x128xf32>
    %10 = arith.addf %7, %9 : vector<32x128xf32>
    %11 = vector.broadcast %3 : vector<1x128xf32> to vector<32x128xf32>
    %12 = arith.mulf %10, %11 : vector<32x128xf32>
    %cst_9 = arith.constant 0.000000e+00 : f32
    %13 = vector.broadcast %cst_9 : f32 to vector<32x8xf32>
    %c0_10 = arith.constant 0 : index
    %c0_11 = arith.constant 0 : index
    %14 = vector.load %arg13[%c0_10, %c0_11] : memref<32x144xf32, #tpu.memory_space<vmem>>, vector<32x8xf32>
    tpu.vector_store %arg13[%c0_10, %c0_11], %13 {strides = array<i32>} : memref<32x144xf32, #tpu.memory_space<vmem>>, vector<32x8xf32>,
    %cst_12 = arith.constant 0.000000e+00 : f32
    %15 = vector.broadcast %cst_12 : f32 to vector<32x8xf32>
    %c0_13 = arith.constant 0 : index
    %c136 = arith.constant 136 : index
    %16 = vector.load %arg13[%c0_13, %c136] : memref<32x144xf32, #tpu.memory_space<vmem>>, vector<32x8xf32>
    tpu.vector_store %arg13[%c0_13, %c136], %15 {strides = array<i32>} : memref<32x144xf32, #tpu.memory_space<vmem>>, vector<32x8xf32>,
    %cst_14 = arith.constant 0.000000e+00 : f32
    %17 = vector.broadcast %cst_14 : f32 to vector<32x128xf32>
    %c0_15 = arith.constant 0 : index
    %c8 = arith.constant 8 : index
    %18 = vector.load %arg13[%c0_15, %c8] : memref<32x144xf32, #tpu.memory_space<vmem>>, vector<32x128xf32>
    tpu.vector_store %arg13[%c0_15, %c8], %12 {strides = array<i32>} : memref<32x144xf32, #tpu.memory_space<vmem>>, vector<32x128xf32>,
    %c0_16 = arith.constant 0 : index
    %c7 = arith.constant 7 : index
    %19 = vector.load %arg13[%c0_16, %c7] : memref<32x144xf32, #tpu.memory_space<vmem>>, vector<32x128xf32>
    %c0_17 = arith.constant 0 : index
    %c0_18 = arith.constant 0 : index
    %20 = vector.load %arg14[%c0_17, %c0_18] : memref<96x128xf32, #tpu.memory_space<vmem>>, vector<32x128xf32>
    tpu.vector_store %arg14[%c0_17, %c0_18], %19 {strides = array<i32>} : memref<96x128xf32, #tpu.memory_space<vmem>>, vector<32x128xf32>,
    %c0_19 = arith.constant 0 : index
    %c8_20 = arith.constant 8 : index
    %21 = vector.load %arg13[%c0_19, %c8_20] : memref<32x144xf32, #tpu.memory_space<vmem>>, vector<32x128xf32>
    %c32 = arith.constant 32 : index
    %c0_21 = arith.constant 0 : index
    %22 = vector.load %arg14[%c32, %c0_21] : memref<96x128xf32, #tpu.memory_space<vmem>>, vector<32x128xf32>
    tpu.vector_store %arg14[%c32, %c0_21], %21 {strides = array<i32>} : memref<96x128xf32, #tpu.memory_space<vmem>>, vector<32x128xf32>,
    %c0_22 = arith.constant 0 : index
    %c9 = arith.constant 9 : index
    %23 = vector.load %arg13[%c0_22, %c9] : memref<32x144xf32, #tpu.memory_space<vmem>>, vector<32x128xf32>
    %c64 = arith.constant 64 : index
    %c0_23 = arith.constant 0 : index
    %24 = vector.load %arg14[%c64, %c0_23] : memref<96x128xf32, #tpu.memory_space<vmem>>, vector<32x128xf32>
    tpu.vector_store %arg14[%c64, %c0_23], %23 {strides = array<i32>} : memref<96x128xf32, #tpu.memory_space<vmem>>, vector<32x128xf32>,
    %c0_24 = arith.constant 0 : index
    %c0_25 = arith.constant 0 : index
    %c0_26 = arith.constant 0 : index
    %25 = vector.load %arg5[%c0_24, %c0_25, %c0_26] : memref<4x64x96xf32, #tpu.memory_space<vmem>>, vector<1x64x96xf32>
    %26 = vector.shape_cast %25 : vector<1x64x96xf32> to vector<64x96xf32>
    %c0_27 = arith.constant 0 : index
    %c0_28 = arith.constant 0 : index
    %27 = vector.load %arg14[%c0_27, %c0_28] : memref<96x128xf32, #tpu.memory_space<vmem>>, vector<96x128xf32>
    %cst_29 = arith.constant dense<0.000000e+00> : vector<64x128xf32>
    %28 = tpu.matmul %26, %27, %cst_29 {dimension_numbers = #tpu.dot_dimension_numbers<[1], [0], [0], [1], [0, 0, 1, 1], [], []>} : vector<64x96xf32>, vector<96x128xf32>, vector<64x128xf32> -> vector<64x128xf32>
    %c0_30 = arith.constant 0 : index
    %c0_31 = arith.constant 0 : index
    %c0_32 = arith.constant 0 : index
    %29 = vector.load %arg6[%c0_30, %c0_31, %c0_32] : memref<4x64x1xf32, #tpu.memory_space<vmem>>, vector<1x64x1xf32>
    %30 = vector.shape_cast %29 : vector<1x64x1xf32> to vector<64x1xf32>
    %31 = vector.broadcast %30 : vector<64x1xf32> to vector<64x128xf32>
    %32 = arith.addf %28, %31 : vector<64x128xf32>
    %33 = vector.extract_strided_slice %32 {offsets = [0, 0], sizes = [32, 128], strides = [1, 1]} : vector<64x128xf32> to vector<32x128xf32>
    %34 = math.tanh %33 : vector<32x128xf32>
    %35 = vector.extract_strided_slice %32 {offsets = [32, 0], sizes = [32, 128], strides = [1, 1]} : vector<64x128xf32> to vector<32x128xf32>
    %36 = arith.negf %35 : vector<32x128xf32>
    %37 = math.exp %36 : vector<32x128xf32>
    %cst_33 = arith.constant 1.000000e+00 : f32
    %38 = vector.broadcast %cst_33 : f32 to vector<32x128xf32>
    %39 = arith.addf %38, %37 : vector<32x128xf32>
    %40 = arith.divf %38, %39 : vector<32x128xf32>
    %41 = arith.mulf %34, %40 : vector<32x128xf32>
    %c0_34 = arith.constant 0 : index
    %c0_35 = arith.constant 0 : index
    %c0_36 = arith.constant 0 : index
    %42 = vector.load %arg7[%c0_34, %c0_35, %c0_36] : memref<4x64x32xf32, #tpu.memory_space<vmem>>, vector<1x64x32xf32>
    %43 = vector.shape_cast %42 : vector<1x64x32xf32> to vector<64x32xf32>
    %cst_37 = arith.constant dense<0.000000e+00> : vector<64x128xf32>
    %44 = tpu.matmul %43, %41, %cst_37 {dimension_numbers = #tpu.dot_dimension_numbers<[1], [0], [0], [1], [0, 0, 1, 1], [], []>} : vector<64x32xf32>, vector<32x128xf32>, vector<64x128xf32> -> vector<64x128xf32>
    %c0_38 = arith.constant 0 : index
    %c0_39 = arith.constant 0 : index
    %c0_40 = arith.constant 0 : index
    %45 = vector.load %arg8[%c0_38, %c0_39, %c0_40] : memref<4x64x1xf32, #tpu.memory_space<vmem>>, vector<1x64x1xf32>
    %46 = vector.shape_cast %45 : vector<1x64x1xf32> to vector<64x1xf32>
    %47 = vector.broadcast %46 : vector<64x1xf32> to vector<64x128xf32>
    %48 = arith.addf %44, %47 : vector<64x128xf32>
    %49 = vector.extract_strided_slice %48 {offsets = [0, 0], sizes = [32, 128], strides = [1, 1]} : vector<64x128xf32> to vector<32x128xf32>
    %50 = arith.addf %12, %49 : vector<32x128xf32>
    %51 = vector.broadcast %3 : vector<1x128xf32> to vector<32x128xf32>
    %52 = arith.mulf %50, %51 : vector<32x128xf32>
    %53 = vector.extract_strided_slice %48 {offsets = [32, 0], sizes = [32, 128], strides = [1, 1]} : vector<64x128xf32> to vector<32x128xf32>
    %54 = arith.addf %17, %53 : vector<32x128xf32>
    %c0_41 = arith.constant 0 : index
    %c8_42 = arith.constant 8 : index
    %55 = vector.load %arg13[%c0_41, %c8_42] : memref<32x144xf32, #tpu.memory_space<vmem>>, vector<32x128xf32>
    tpu.vector_store %arg13[%c0_41, %c8_42], %52 {strides = array<i32>} : memref<32x144xf32, #tpu.memory_space<vmem>>, vector<32x128xf32>,
    %c0_43 = arith.constant 0 : index
    %c6 = arith.constant 6 : index
    %56 = vector.load %arg13[%c0_43, %c6] : memref<32x144xf32, #tpu.memory_space<vmem>>, vector<32x128xf32>
    %c0_44 = arith.constant 0 : index
    %c0_45 = arith.constant 0 : index
    %57 = vector.load %arg14[%c0_44, %c0_45] : memref<96x128xf32, #tpu.memory_space<vmem>>, vector<32x128xf32>
    tpu.vector_store %arg14[%c0_44, %c0_45], %56 {strides = array<i32>} : memref<96x128xf32, #tpu.memory_space<vmem>>, vector<32x128xf32>,
    %c0_46 = arith.constant 0 : index
    %c8_47 = arith.constant 8 : index
    %58 = vector.load %arg13[%c0_46, %c8_47] : memref<32x144xf32, #tpu.memory_space<vmem>>, vector<32x128xf32>
    %c32_48 = arith.constant 32 : index
    %c0_49 = arith.constant 0 : index
    %59 = vector.load %arg14[%c32_48, %c0_49] : memref<96x128xf32, #tpu.memory_space<vmem>>, vector<32x128xf32>
    tpu.vector_store %arg14[%c32_48, %c0_49], %58 {strides = array<i32>} : memref<96x128xf32, #tpu.memory_space<vmem>>, vector<32x128xf32>,
    %c0_50 = arith.constant 0 : index
    %c10 = arith.constant 10 : index
    %60 = vector.load %arg13[%c0_50, %c10] : memref<32x144xf32, #tpu.memory_space<vmem>>, vector<32x128xf32>
    %c64_51 = arith.constant 64 : index
    %c0_52 = arith.constant 0 : index
    %61 = vector.load %arg14[%c64_51, %c0_52] : memref<96x128xf32, #tpu.memory_space<vmem>>, vector<32x128xf32>
    tpu.vector_store %arg14[%c64_51, %c0_52], %60 {strides = array<i32>} : memref<96x128xf32, #tpu.memory_space<vmem>>, vector<32x128xf32>,
    %c1 = arith.constant 1 : index
    %c0_53 = arith.constant 0 : index
    %c0_54 = arith.constant 0 : index
    %62 = vector.load %arg5[%c1, %c0_53, %c0_54] : memref<4x64x96xf32, #tpu.memory_space<vmem>>, vector<1x64x96xf32>
    %63 = vector.shape_cast %62 : vector<1x64x96xf32> to vector<64x96xf32>
    %c0_55 = arith.constant 0 : index
    %c0_56 = arith.constant 0 : index
    %64 = vector.load %arg14[%c0_55, %c0_56] : memref<96x128xf32, #tpu.memory_space<vmem>>, vector<96x128xf32>
    %cst_57 = arith.constant dense<0.000000e+00> : vector<64x128xf32>
    %65 = tpu.matmul %63, %64, %cst_57 {dimension_numbers = #tpu.dot_dimension_numbers<[1], [0], [0], [1], [0, 0, 1, 1], [], []>} : vector<64x96xf32>, vector<96x128xf32>, vector<64x128xf32> -> vector<64x128xf32>
    %c1_58 = arith.constant 1 : index
    %c0_59 = arith.constant 0 : index
    %c0_60 = arith.constant 0 : index
    %66 = vector.load %arg6[%c1_58, %c0_59, %c0_60] : memref<4x64x1xf32, #tpu.memory_space<vmem>>, vector<1x64x1xf32>
    %67 = vector.shape_cast %66 : vector<1x64x1xf32> to vector<64x1xf32>
    %68 = vector.broadcast %67 : vector<64x1xf32> to vector<64x128xf32>
    %69 = arith.addf %65, %68 : vector<64x128xf32>
    %70 = vector.extract_strided_slice %69 {offsets = [0, 0], sizes = [32, 128], strides = [1, 1]} : vector<64x128xf32> to vector<32x128xf32>
    %71 = math.tanh %70 : vector<32x128xf32>
    %72 = vector.extract_strided_slice %69 {offsets = [32, 0], sizes = [32, 128], strides = [1, 1]} : vector<64x128xf32> to vector<32x128xf32>
    %73 = arith.negf %72 : vector<32x128xf32>
    %74 = math.exp %73 : vector<32x128xf32>
    %cst_61 = arith.constant 1.000000e+00 : f32
    %75 = vector.broadcast %cst_61 : f32 to vector<32x128xf32>
    %76 = arith.addf %75, %74 : vector<32x128xf32>
    %77 = arith.divf %75, %76 : vector<32x128xf32>
    %78 = arith.mulf %71, %77 : vector<32x128xf32>
    %c1_62 = arith.constant 1 : index
    %c0_63 = arith.constant 0 : index
    %c0_64 = arith.constant 0 : index
    %79 = vector.load %arg7[%c1_62, %c0_63, %c0_64] : memref<4x64x32xf32, #tpu.memory_space<vmem>>, vector<1x64x32xf32>
    %80 = vector.shape_cast %79 : vector<1x64x32xf32> to vector<64x32xf32>
    %cst_65 = arith.constant dense<0.000000e+00> : vector<64x128xf32>
    %81 = tpu.matmul %80, %78, %cst_65 {dimension_numbers = #tpu.dot_dimension_numbers<[1], [0], [0], [1], [0, 0, 1, 1], [], []>} : vector<64x32xf32>, vector<32x128xf32>, vector<64x128xf32> -> vector<64x128xf32>
    %c1_66 = arith.constant 1 : index
    %c0_67 = arith.constant 0 : index
    %c0_68 = arith.constant 0 : index
    %82 = vector.load %arg8[%c1_66, %c0_67, %c0_68] : memref<4x64x1xf32, #tpu.memory_space<vmem>>, vector<1x64x1xf32>
    %83 = vector.shape_cast %82 : vector<1x64x1xf32> to vector<64x1xf32>
    %84 = vector.broadcast %83 : vector<64x1xf32> to vector<64x128xf32>
    %85 = arith.addf %81, %84 : vector<64x128xf32>
    %86 = vector.extract_strided_slice %85 {offsets = [0, 0], sizes = [32, 128], strides = [1, 1]} : vector<64x128xf32> to vector<32x128xf32>
    %87 = arith.addf %52, %86 : vector<32x128xf32>
    %88 = vector.broadcast %3 : vector<1x128xf32> to vector<32x128xf32>
    %89 = arith.mulf %87, %88 : vector<32x128xf32>
    %90 = vector.extract_strided_slice %85 {offsets = [32, 0], sizes = [32, 128], strides = [1, 1]} : vector<64x128xf32> to vector<32x128xf32>
    %91 = arith.addf %54, %90 : vector<32x128xf32>
    %c0_69 = arith.constant 0 : index
    %c8_70 = arith.constant 8 : index
    %92 = vector.load %arg13[%c0_69, %c8_70] : memref<32x144xf32, #tpu.memory_space<vmem>>, vector<32x128xf32>
    tpu.vector_store %arg13[%c0_69, %c8_70], %89 {strides = array<i32>} : memref<32x144xf32, #tpu.memory_space<vmem>>, vector<32x128xf32>,
    %c0_71 = arith.constant 0 : index
    %c4 = arith.constant 4 : index
    %93 = vector.load %arg13[%c0_71, %c4] : memref<32x144xf32, #tpu.memory_space<vmem>>, vector<32x128xf32>
    %c0_72 = arith.constant 0 : index
    %c0_73 = arith.constant 0 : index
    %94 = vector.load %arg14[%c0_72, %c0_73] : memref<96x128xf32, #tpu.memory_space<vmem>>, vector<32x128xf32>
    tpu.vector_store %arg14[%c0_72, %c0_73], %93 {strides = array<i32>} : memref<96x128xf32, #tpu.memory_space<vmem>>, vector<32x128xf32>,
    %c0_74 = arith.constant 0 : index
    %c8_75 = arith.constant 8 : index
    %95 = vector.load %arg13[%c0_74, %c8_75] : memref<32x144xf32, #tpu.memory_space<vmem>>, vector<32x128xf32>
    %c32_76 = arith.constant 32 : index
    %c0_77 = arith.constant 0 : index
    %96 = vector.load %arg14[%c32_76, %c0_77] : memref<96x128xf32, #tpu.memory_space<vmem>>, vector<32x128xf32>
    tpu.vector_store %arg14[%c32_76, %c0_77], %95 {strides = array<i32>} : memref<96x128xf32, #tpu.memory_space<vmem>>, vector<32x128xf32>,
    %c0_78 = arith.constant 0 : index
    %c12 = arith.constant 12 : index
    %97 = vector.load %arg13[%c0_78, %c12] : memref<32x144xf32, #tpu.memory_space<vmem>>, vector<32x128xf32>
    %c64_79 = arith.constant 64 : index
    %c0_80 = arith.constant 0 : index
    %98 = vector.load %arg14[%c64_79, %c0_80] : memref<96x128xf32, #tpu.memory_space<vmem>>, vector<32x128xf32>
    tpu.vector_store %arg14[%c64_79, %c0_80], %97 {strides = array<i32>} : memref<96x128xf32, #tpu.memory_space<vmem>>, vector<32x128xf32>,
    %c2 = arith.constant 2 : index
    %c0_81 = arith.constant 0 : index
    %c0_82 = arith.constant 0 : index
    %99 = vector.load %arg5[%c2, %c0_81, %c0_82] : memref<4x64x96xf32, #tpu.memory_space<vmem>>, vector<1x64x96xf32>
    %100 = vector.shape_cast %99 : vector<1x64x96xf32> to vector<64x96xf32>
    %c0_83 = arith.constant 0 : index
    %c0_84 = arith.constant 0 : index
    %101 = vector.load %arg14[%c0_83, %c0_84] : memref<96x128xf32, #tpu.memory_space<vmem>>, vector<96x128xf32>
    %cst_85 = arith.constant dense<0.000000e+00> : vector<64x128xf32>
    %102 = tpu.matmul %100, %101, %cst_85 {dimension_numbers = #tpu.dot_dimension_numbers<[1], [0], [0], [1], [0, 0, 1, 1], [], []>} : vector<64x96xf32>, vector<96x128xf32>, vector<64x128xf32> -> vector<64x128xf32>
    %c2_86 = arith.constant 2 : index
    %c0_87 = arith.constant 0 : index
    %c0_88 = arith.constant 0 : index
    %103 = vector.load %arg6[%c2_86, %c0_87, %c0_88] : memref<4x64x1xf32, #tpu.memory_space<vmem>>, vector<1x64x1xf32>
    %104 = vector.shape_cast %103 : vector<1x64x1xf32> to vector<64x1xf32>
    %105 = vector.broadcast %104 : vector<64x1xf32> to vector<64x128xf32>
    %106 = arith.addf %102, %105 : vector<64x128xf32>
    %107 = vector.extract_strided_slice %106 {offsets = [0, 0], sizes = [32, 128], strides = [1, 1]} : vector<64x128xf32> to vector<32x128xf32>
    %108 = math.tanh %107 : vector<32x128xf32>
    %109 = vector.extract_strided_slice %106 {offsets = [32, 0], sizes = [32, 128], strides = [1, 1]} : vector<64x128xf32> to vector<32x128xf32>
    %110 = arith.negf %109 : vector<32x128xf32>
    %111 = math.exp %110 : vector<32x128xf32>
    %cst_89 = arith.constant 1.000000e+00 : f32
    %112 = vector.broadcast %cst_89 : f32 to vector<32x128xf32>
    %113 = arith.addf %112, %111 : vector<32x128xf32>
    %114 = arith.divf %112, %113 : vector<32x128xf32>
    %115 = arith.mulf %108, %114 : vector<32x128xf32>
    %c2_90 = arith.constant 2 : index
    %c0_91 = arith.constant 0 : index
    %c0_92 = arith.constant 0 : index
    %116 = vector.load %arg7[%c2_90, %c0_91, %c0_92] : memref<4x64x32xf32, #tpu.memory_space<vmem>>, vector<1x64x32xf32>
    %117 = vector.shape_cast %116 : vector<1x64x32xf32> to vector<64x32xf32>
    %cst_93 = arith.constant dense<0.000000e+00> : vector<64x128xf32>
    %118 = tpu.matmul %117, %115, %cst_93 {dimension_numbers = #tpu.dot_dimension_numbers<[1], [0], [0], [1], [0, 0, 1, 1], [], []>} : vector<64x32xf32>, vector<32x128xf32>, vector<64x128xf32> -> vector<64x128xf32>
    %c2_94 = arith.constant 2 : index
    %c0_95 = arith.constant 0 : index
    %c0_96 = arith.constant 0 : index
    %119 = vector.load %arg8[%c2_94, %c0_95, %c0_96] : memref<4x64x1xf32, #tpu.memory_space<vmem>>, vector<1x64x1xf32>
    %120 = vector.shape_cast %119 : vector<1x64x1xf32> to vector<64x1xf32>
    %121 = vector.broadcast %120 : vector<64x1xf32> to vector<64x128xf32>
    %122 = arith.addf %118, %121 : vector<64x128xf32>
    %123 = vector.extract_strided_slice %122 {offsets = [0, 0], sizes = [32, 128], strides = [1, 1]} : vector<64x128xf32> to vector<32x128xf32>
    %124 = arith.addf %89, %123 : vector<32x128xf32>
    %125 = vector.broadcast %3 : vector<1x128xf32> to vector<32x128xf32>
    %126 = arith.mulf %124, %125 : vector<32x128xf32>
    %127 = vector.extract_strided_slice %122 {offsets = [32, 0], sizes = [32, 128], strides = [1, 1]} : vector<64x128xf32> to vector<32x128xf32>
    %128 = arith.addf %91, %127 : vector<32x128xf32>
    %c0_97 = arith.constant 0 : index
    %c8_98 = arith.constant 8 : index
    %129 = vector.load %arg13[%c0_97, %c8_98] : memref<32x144xf32, #tpu.memory_space<vmem>>, vector<32x128xf32>
    tpu.vector_store %arg13[%c0_97, %c8_98], %126 {strides = array<i32>} : memref<32x144xf32, #tpu.memory_space<vmem>>, vector<32x128xf32>,
    %c0_99 = arith.constant 0 : index
    %c0_100 = arith.constant 0 : index
    %130 = vector.load %arg13[%c0_99, %c0_100] : memref<32x144xf32, #tpu.memory_space<vmem>>, vector<32x128xf32>
    %c0_101 = arith.constant 0 : index
    %c0_102 = arith.constant 0 : index
    %131 = vector.load %arg14[%c0_101, %c0_102] : memref<96x128xf32, #tpu.memory_space<vmem>>, vector<32x128xf32>
    tpu.vector_store %arg14[%c0_101, %c0_102], %130 {strides = array<i32>} : memref<96x128xf32, #tpu.memory_space<vmem>>, vector<32x128xf32>,
    %c0_103 = arith.constant 0 : index
    %c8_104 = arith.constant 8 : index
    %132 = vector.load %arg13[%c0_103, %c8_104] : memref<32x144xf32, #tpu.memory_space<vmem>>, vector<32x128xf32>
    %c32_105 = arith.constant 32 : index
    %c0_106 = arith.constant 0 : index
    %133 = vector.load %arg14[%c32_105, %c0_106] : memref<96x128xf32, #tpu.memory_space<vmem>>, vector<32x128xf32>
    tpu.vector_store %arg14[%c32_105, %c0_106], %132 {strides = array<i32>} : memref<96x128xf32, #tpu.memory_space<vmem>>, vector<32x128xf32>,
    %c0_107 = arith.constant 0 : index
    %c16 = arith.constant 16 : index
    %134 = vector.load %arg13[%c0_107, %c16] : memref<32x144xf32, #tpu.memory_space<vmem>>, vector<32x128xf32>
    %c64_108 = arith.constant 64 : index
    %c0_109 = arith.constant 0 : index
    %135 = vector.load %arg14[%c64_108, %c0_109] : memref<96x128xf32, #tpu.memory_space<vmem>>, vector<32x128xf32>
    tpu.vector_store %arg14[%c64_108, %c0_109], %134 {strides = array<i32>} : memref<96x128xf32, #tpu.memory_space<vmem>>, vector<32x128xf32>,
    %c3 = arith.constant 3 : index
    %c0_110 = arith.constant 0 : index
    %c0_111 = arith.constant 0 : index
    %136 = vector.load %arg5[%c3, %c0_110, %c0_111] : memref<4x64x96xf32, #tpu.memory_space<vmem>>, vector<1x64x96xf32>
    %137 = vector.shape_cast %136 : vector<1x64x96xf32> to vector<64x96xf32>
    %c0_112 = arith.constant 0 : index
    %c0_113 = arith.constant 0 : index
    %138 = vector.load %arg14[%c0_112, %c0_113] : memref<96x128xf32, #tpu.memory_space<vmem>>, vector<96x128xf32>
    %cst_114 = arith.constant dense<0.000000e+00> : vector<64x128xf32>
    %139 = tpu.matmul %137, %138, %cst_114 {dimension_numbers = #tpu.dot_dimension_numbers<[1], [0], [0], [1], [0, 0, 1, 1], [], []>} : vector<64x96xf32>, vector<96x128xf32>, vector<64x128xf32> -> vector<64x128xf32>
    %c3_115 = arith.constant 3 : index
    %c0_116 = arith.constant 0 : index
    %c0_117 = arith.constant 0 : index
    %140 = vector.load %arg6[%c3_115, %c0_116, %c0_117] : memref<4x64x1xf32, #tpu.memory_space<vmem>>, vector<1x64x1xf32>
    %141 = vector.shape_cast %140 : vector<1x64x1xf32> to vector<64x1xf32>
    %142 = vector.broadcast %141 : vector<64x1xf32> to vector<64x128xf32>
    %143 = arith.addf %139, %142 : vector<64x128xf32>
    %144 = vector.extract_strided_slice %143 {offsets = [0, 0], sizes = [32, 128], strides = [1, 1]} : vector<64x128xf32> to vector<32x128xf32>
    %145 = math.tanh %144 : vector<32x128xf32>
    %146 = vector.extract_strided_slice %143 {offsets = [32, 0], sizes = [32, 128], strides = [1, 1]} : vector<64x128xf32> to vector<32x128xf32>
    %147 = arith.negf %146 : vector<32x128xf32>
    %148 = math.exp %147 : vector<32x128xf32>
    %cst_118 = arith.constant 1.000000e+00 : f32
    %149 = vector.broadcast %cst_118 : f32 to vector<32x128xf32>
    %150 = arith.addf %149, %148 : vector<32x128xf32>
    %151 = arith.divf %149, %150 : vector<32x128xf32>
    %152 = arith.mulf %145, %151 : vector<32x128xf32>
    %c3_119 = arith.constant 3 : index
    %c32_120 = arith.constant 32 : index
    %c0_121 = arith.constant 0 : index
    %153 = vector.load %arg7[%c3_119, %c32_120, %c0_121] : memref<4x64x32xf32, #tpu.memory_space<vmem>>, vector<1x32x32xf32>
    %154 = vector.shape_cast %153 : vector<1x32x32xf32> to vector<32x32xf32>
    %cst_122 = arith.constant dense<0.000000e+00> : vector<32x128xf32>
    %155 = tpu.matmul %154, %152, %cst_122 {dimension_numbers = #tpu.dot_dimension_numbers<[1], [0], [0], [1], [0, 0, 1, 1], [], []>} : vector<32x32xf32>, vector<32x128xf32>, vector<32x128xf32> -> vector<32x128xf32>
    %c3_123 = arith.constant 3 : index
    %c32_124 = arith.constant 32 : index
    %c0_125 = arith.constant 0 : index
    %156 = vector.load %arg8[%c3_123, %c32_124, %c0_125] : memref<4x64x1xf32, #tpu.memory_space<vmem>>, vector<1x32x1xf32>
    %157 = vector.shape_cast %156 : vector<1x32x1xf32> to vector<32x1xf32>
    %158 = vector.broadcast %157 : vector<32x1xf32> to vector<32x128xf32>
    %159 = arith.addf %155, %158 : vector<32x128xf32>
    %160 = arith.addf %128, %159 : vector<32x128xf32>
    %161 = vector.broadcast %3 : vector<1x128xf32> to vector<32x128xf32>
    %162 = arith.mulf %160, %161 : vector<32x128xf32>
    %c0_126 = arith.constant 0 : index
    %c0_127 = arith.constant 0 : index
    %163 = vector.load %arg9[%c0_126, %c0_127] : memref<4x32xf32, #tpu.memory_space<vmem>>, vector<4x32xf32>
    %cst_128 = arith.constant dense<0.000000e+00> : vector<4x128xf32>
    %164 = tpu.matmul %163, %162, %cst_128 {dimension_numbers = #tpu.dot_dimension_numbers<[1], [0], [0], [1], [0, 0, 1, 1], [], []>} : vector<4x32xf32>, vector<32x128xf32>, vector<4x128xf32> -> vector<4x128xf32>
    %c0_129 = arith.constant 0 : index
    %c0_130 = arith.constant 0 : index
    %165 = vector.load %arg10[%c0_129, %c0_130] : memref<4x1xf32, #tpu.memory_space<vmem>>, vector<4x1xf32>
    %166 = vector.broadcast %165 : vector<4x1xf32> to vector<4x128xf32>
    %167 = arith.addf %164, %166 : vector<4x128xf32>
    %168 = vector.extract_strided_slice %167 {offsets = [0, 0], sizes = [2, 128], strides = [1, 1]} : vector<4x128xf32> to vector<2x128xf32>
    %169 = vector.extract_strided_slice %167 {offsets = [2, 0], sizes = [2, 128], strides = [1, 1]} : vector<4x128xf32> to vector<2x128xf32>
    %170 = vector.broadcast %3 : vector<1x128xf32> to vector<2x128xf32>
    %171 = arith.mulf %169, %170 : vector<2x128xf32>
    %c0_131 = arith.constant 0 : index
    %c0_132 = arith.constant 0 : index
    %c0_133 = arith.constant 0 : index
    %172 = vector.load %arg11[%c0_131, %c0_132, %c0_133] : memref<1x4x128xf32, #tpu.memory_space<vmem>>, vector<1x2x128xf32>
    %173 = vector.shape_cast %172 : vector<1x2x128xf32> to vector<2x128xf32>
    %174 = vector.shape_cast %4 : vector<2x128xf32> to vector<1x2x128xf32>
    tpu.vector_store %arg11[%c0_131, %c0_132, %c0_133], %174 {strides = array<i32>} : memref<1x4x128xf32, #tpu.memory_space<vmem>>, vector<1x2x128xf32>,
    %175 = math.exp %169 : vector<2x128xf32>
    %176 = arith.mulf %175, %5 : vector<2x128xf32>
    %177 = arith.addf %168, %176 : vector<2x128xf32>
    %178 = vector.broadcast %3 : vector<1x128xf32> to vector<2x128xf32>
    %179 = arith.mulf %177, %178 : vector<2x128xf32>
    %c0_134 = arith.constant 0 : index
    %c2_135 = arith.constant 2 : index
    %c0_136 = arith.constant 0 : index
    %180 = vector.load %arg11[%c0_134, %c2_135, %c0_136] : memref<1x4x128xf32, #tpu.memory_space<vmem>>, vector<1x2x128xf32>
    %181 = vector.shape_cast %180 : vector<1x2x128xf32> to vector<2x128xf32>
    %182 = vector.shape_cast %179 : vector<2x128xf32> to vector<1x2x128xf32>
    tpu.vector_store %arg11[%c0_134, %c2_135, %c0_136], %182 {strides = array<i32>} : memref<1x4x128xf32, #tpu.memory_space<vmem>>, vector<1x2x128xf32>,
    %cst_137 = arith.constant dense<0.000000e+00> : vector<128xf32>
    %183 = vector.multi_reduction <add>, %171, %cst_137 [0] : vector<2x128xf32> to vector<128xf32>
    %184 = vector.shape_cast %183 : vector<128xf32> to vector<1x128xf32>
    %c0_138 = arith.constant 0 : index
    %c0_139 = arith.constant 0 : index
    %c0_140 = arith.constant 0 : index
    %185 = vector.load %arg12[%c0_138, %c0_139, %c0_140] : memref<1x1x128xf32, #tpu.memory_space<vmem>>, vector<1x1x128xf32>
    %186 = vector.shape_cast %185 : vector<1x1x128xf32> to vector<1x128xf32>
    %187 = vector.shape_cast %184 : vector<1x128xf32> to vector<1x1x128xf32>
    tpu.vector_store %arg12[%c0_138, %c0_139, %c0_140], %187 {strides = array<i32>} : memref<1x1x128xf32, #tpu.memory_space<vmem>>, vector<1x1x128xf32>,
    return
  }
  func.func @transform_0(%arg0: i32) -> (i32, i32, i32) {
    %c0_i32 = arith.constant 0 : i32
    %c0_i32_0 = arith.constant 0 : i32
    %c0_i32_1 = arith.constant 0 : i32
    return %arg0, %c0_i32, %c0_i32_0 : i32, i32, i32
  }
  func.func @transform_1(%arg0: i32) -> (i32, i32, i32) {
    %c0_i32 = arith.constant 0 : i32
    %c0_i32_0 = arith.constant 0 : i32
    %c0_i32_1 = arith.constant 0 : i32
    return %arg0, %c0_i32, %c0_i32_0 : i32, i32, i32
  }
  func.func @transform_2(%arg0: i32) -> (i32, i32) {
    %c0_i32 = arith.constant 0 : i32
    %c0_i32_0 = arith.constant 0 : i32
    %c0_i32_1 = arith.constant 0 : i32
    return %c0_i32, %c0_i32_0 : i32, i32
  }
  func.func @transform_3(%arg0: i32) -> (i32, i32) {
    %c0_i32 = arith.constant 0 : i32
    %c0_i32_0 = arith.constant 0 : i32
    %c0_i32_1 = arith.constant 0 : i32
    return %c0_i32, %c0_i32_0 : i32, i32
  }
  func.func @transform_4(%arg0: i32) -> (i32, i32, i32) {
    %c0_i32 = arith.constant 0 : i32
    %c0_i32_0 = arith.constant 0 : i32
    %c0_i32_1 = arith.constant 0 : i32
    %c0_i32_2 = arith.constant 0 : i32
    return %c0_i32, %c0_i32_0, %c0_i32_1 : i32, i32, i32
  }
  func.func @transform_5(%arg0: i32) -> (i32, i32, i32) {
    %c0_i32 = arith.constant 0 : i32
    %c0_i32_0 = arith.constant 0 : i32
    %c0_i32_1 = arith.constant 0 : i32
    %c0_i32_2 = arith.constant 0 : i32
    return %c0_i32, %c0_i32_0, %c0_i32_1 : i32, i32, i32
  }
  func.func @transform_6(%arg0: i32) -> (i32, i32, i32) {
    %c0_i32 = arith.constant 0 : i32
    %c0_i32_0 = arith.constant 0 : i32
    %c0_i32_1 = arith.constant 0 : i32
    %c0_i32_2 = arith.constant 0 : i32
    return %c0_i32, %c0_i32_0, %c0_i32_1 : i32, i32, i32
  }
  func.func @transform_7(%arg0: i32) -> (i32, i32, i32) {
    %c0_i32 = arith.constant 0 : i32
    %c0_i32_0 = arith.constant 0 : i32
    %c0_i32_1 = arith.constant 0 : i32
    %c0_i32_2 = arith.constant 0 : i32
    return %c0_i32, %c0_i32_0, %c0_i32_1 : i32, i32, i32
  }
  func.func @transform_8(%arg0: i32) -> (i32, i32) {
    %c0_i32 = arith.constant 0 : i32
    %c0_i32_0 = arith.constant 0 : i32
    %c0_i32_1 = arith.constant 0 : i32
    return %c0_i32, %c0_i32_0 : i32, i32
  }
  func.func @transform_9(%arg0: i32) -> (i32, i32) {
    %c0_i32 = arith.constant 0 : i32
    %c0_i32_0 = arith.constant 0 : i32
    %c0_i32_1 = arith.constant 0 : i32
    return %c0_i32, %c0_i32_0 : i32, i32
  }
  func.func @transform_10(%arg0: i32) -> (i32, i32, i32) {
    %c0_i32 = arith.constant 0 : i32
    %c0_i32_0 = arith.constant 0 : i32
    %c0_i32_1 = arith.constant 0 : i32
    return %arg0, %c0_i32, %c0_i32_0 : i32, i32, i32
  }
  func.func @transform_11(%arg0: i32) -> (i32, i32, i32) {
    %c0_i32 = arith.constant 0 : i32
    %c0_i32_0 = arith.constant 0 : i32
    %c0_i32_1 = arith.constant 0 : i32
    return %arg0, %c0_i32, %c0_i32_0 : i32, i32, i32
  }
}

</mosaic_0001>

<llo_original>
// kernel: tpu_custom_call.1
$region0: #{tpu_custom_call.1}
  #allocation0 [shape = 'u32[]', space=smem, size = 0x4, offset = 0x4, fixed_abs, tag = 'smem constant byte address 0x4 - core index']
  #allocation1 [shape = 'u32[72,128]{1,0:T(1,128)}', space=vmem, size = 0x9000, scoped, tag = 'internal scratch']
  #allocation2 [shape = 'f32[32,144]{1,0:T(8,128)}', space=vmem, size = 0x8000, scoped, tag = 'scratch operand']
  #allocation3 [shape = 'f32[96,128]{1,0:T(8,128)}', space=vmem, size = 0xc000, scoped, tag = 'scratch operand']
  %s0 = inlined_call_operand.vmem [shape: f32[2,4,128], index: 0, kind: input, shape index: {}]
  %s1 = inlined_call_operand.vmem [shape: f32[2,1,128], index: 1, kind: input, shape index: {}]
  %s2 = inlined_call_operand.vmem [shape: f32[32,2], index: 2, kind: input, shape index: {}]
  %s3 = inlined_call_operand.vmem [shape: f32[32,1], index: 3, kind: input, shape index: {}]
  %s4 = inlined_call_operand.vmem [shape: f32[4,64,96], index: 4, kind: input, shape index: {}]
  %s5 = inlined_call_operand.vmem [shape: f32[4,64,1], index: 5, kind: input, shape index: {}]
  %s6 = inlined_call_operand.vmem [shape: f32[4,64,32], index: 6, kind: input, shape index: {}]
  %s7 = inlined_call_operand.vmem [shape: f32[4,64,1], index: 7, kind: input, shape index: {}]
  %s8 = inlined_call_operand.vmem [shape: f32[4,32], index: 8, kind: input, shape index: {}]
  %s9 = inlined_call_operand.vmem [shape: f32[4,1], index: 9, kind: input, shape index: {}]
  %s10 = inlined_call_operand.hbm [shape: f32[2,4,128], index: 10, kind: output, shape index: {0}]
  %s11 = inlined_call_operand.hbm [shape: f32[2,1,128], index: 11, kind: output, shape index: {1}]
  %12 = xla_tuple %s10, %s11
  %s13 = sld [smem:[#allocation0]]
  $region81: #{tpu_custom_call.1} parent=0
    _
  %s15 = ssub.s32 1, %s13
  %s16 = scalar_select 0, %s15, %s13
  $region1: #{tpu_custom_call.1} parent=0
    #allocation4 [shape = 'u8[4096]{0}', space=vmem, size = 0x1000, scoped, tag = 'output window, operand 0']
    #allocation5 [shape = 's32[2]{0}', space=sflag, size = 0x8, scoped, tag = 'scoped memory for tpu_custom_call.1']
    #allocation6 [shape = 'u8[1024]{0}', space=vmem, size = 0x400, scoped, tag = 'output window, operand 1']
    #allocation7 [shape = 's32[2]{0}', space=sflag, size = 0x8, scoped, tag = 'scoped memory for tpu_custom_call.1']
    %17 = vsyncpa [#allocation5], 0
    %s18 = scalar_lea.sflag [#allocation5], 1
    %19 = vsyncpa %s18, 0
    %20 = vsyncpa [#allocation7], 0
    %s21 = scalar_lea.sflag [#allocation7], 1
    %22 = vsyncpa %s21, 0
    loop: start=0, step=1, limit=4
    $region2: #{tpu_custom_call.1} parent=1 // loop_pre_header
      _
    $region3: #{tpu_custom_call.1} parent=1 // loop_header
      %s24 = sphi 0, %s28
      %p25 = scmp.ge.s32.totalorder %s24, 4
      %s34 = sphi 0, %s36
      %s37 = sphi 0, %s34
      %s38 = sphi 0, %s37
      %s54 = sphi 0, %s38
      %s60 = sphi 0, %s62
      %s63 = sphi 0, %s60
      %s64 = sphi 0, %s63
      %s80 = sphi 0, %s64
      %s84 = sphi 0, %s84
      %s86 = sphi 0, %s84
      %s87 = sphi 0, %s86
      %s101 = sphi 0, %s87
      %s105 = sphi 0, %s105
      %s107 = sphi 0, %s105
      %s108 = sphi 0, %s107
      %s122 = sphi 0, %s108
      %s126 = sphi 0, %s126
      %s128 = sphi 0, %s126
      %s129 = sphi 0, %s128
      %s143 = sphi 0, %s129
      %s147 = sphi 0, %s147
      %s149 = sphi 0, %s147
      %s150 = sphi 0, %s149
      %s164 = sphi 0, %s150
      %s168 = sphi 0, %s168
      %s170 = sphi 0, %s168
      %s171 = sphi 0, %s170
      %s185 = sphi 0, %s171
      %s189 = sphi 0, %s189
      %s191 = sphi 0, %s189
      %s192 = sphi 0, %s191
      %s206 = sphi 0, %s192
      %s210 = sphi 0, %s210
      %s212 = sphi 0, %s210
      %s213 = sphi 0, %s212
      %s227 = sphi 0, %s213
      %s231 = sphi 0, %s231
      %s233 = sphi 0, %s231
      %s234 = sphi 0, %s233
      %s248 = sphi 0, %s234
      %s254 = sphi 0, %s256
      %s257 = sphi 0, %s254
      %s258 = sphi 0, %s257
      %s274 = sphi 0, %s258
      %s280 = sphi 0, %s282
      %s283 = sphi 0, %s280
      %s284 = sphi 0, %s283
      %s300 = sphi 0, %s284
    $region4: #{tpu_custom_call.1} parent=1 // loop_header_branch
      %27 = sbr.rel (%p25) target = $region8
    $region5: #{tpu_custom_call.1} parent=1 // loop_body
      %s29 = ssub.s32 %s24, 1
      %s30 = ssub.s32 %s24, 2
      %s31 = sadd.s32 %s24, 1
      %s32 = ssub.s32 %s24, %s31
      %p33 = scmp.eq.s32.totalorder %s32, 0
      %s35 = sadd.s32 %s34, 1
      %s36 = scalar_select %p33, %s34, %s35
      %p39 = pneg %p33
      %p40 = scmp.eq.s32.totalorder %s24, 1
      %p41 = por %p39, %p40
      %p42 = scmp.ne.s32.totalorder %s34, %s37
      %p43 = scmp.eq.s32.totalorder %s24, 0
      %p44 = por %p42, %p43
      %p45 = scmp.ne.s32.totalorder %s34, %s37
      %p46 = scmp.eq.s32.totalorder %s29, 1
      %p47 = por %p45, %p46
      %p48 = scmp.ne.s32.totalorder %s37, %s38
      %p49 = scmp.eq.s32.totalorder %s29, 0
      %p50 = por %p48, %p49
      %p51 = scmp.ne.s32.totalorder %s37, %s38
      %p52 = scmp.eq.s32.totalorder %s30, 1
      %p53 = por %p51, %p52
      %p55 = scmp.ne.s32.totalorder %s38, %s54
      %p56 = scmp.eq.s32.totalorder %s30, 0
      %p57 = por %p55, %p56
      %s58 = ssub.s32 %s24, %s31
      %p59 = scmp.eq.s32.totalorder %s58, 0
      %s61 = sadd.s32 %s60, 1
      %s62 = scalar_select %p59, %s60, %s61
      %p65 = pneg %p59
      %p66 = scmp.eq.s32.totalorder %s24, 1
      %p67 = por %p65, %p66
      %p68 = scmp.ne.s32.totalorder %s60, %s63
      %p69 = scmp.eq.s32.totalorder %s24, 0
      %p70 = por %p68, %p69
      %p71 = scmp.ne.s32.totalorder %s60, %s63
      %p72 = scmp.eq.s32.totalorder %s29, 1
      %p73 = por %p71, %p72
      %p74 = scmp.ne.s32.totalorder %s63, %s64
      %p75 = scmp.eq.s32.totalorder %s29, 0
      %p76 = por %p74, %p75
      %p77 = scmp.ne.s32.totalorder %s63, %s64
      %p78 = scmp.eq.s32.totalorder %s30, 1
      %p79 = por %p77, %p78
      %p81 = scmp.ne.s32.totalorder %s64, %s80
      %p82 = scmp.eq.s32.totalorder %s30, 0
      %p83 = por %p81, %p82
      %s85 = sadd.s32 %s84, 1
      %p88 = scmp.eq.s32.totalorder %s24, 1
      %p89 = scmp.ne.s32.totalorder %s84, %s86
      %p90 = scmp.eq.s32.totalorder %s24, 0
      %p91 = por %p89, %p90
      %p92 = scmp.ne.s32.totalorder %s84, %s86
      %p93 = scmp.eq.s32.totalorder %s29, 1
      %p94 = por %p92, %p93
      %p95 = scmp.ne.s32.totalorder %s86, %s87
      %p96 = scmp.eq.s32.totalorder %s29, 0
      %p97 = por %p95, %p96
      %p98 = scmp.ne.s32.totalorder %s86, %s87
      %p99 = scmp.eq.s32.totalorder %s30, 1
      %p100 = por %p98, %p99
      %p102 = scmp.ne.s32.totalorder %s87, %s101
      %p103 = scmp.eq.s32.totalorder %s30, 0
      %p104 = por %p102, %p103
      %s106 = sadd.s32 %s105, 1
      %p109 = scmp.eq.s32.totalorder %s24, 1
      %p110 = scmp.ne.s32.totalorder %s105, %s107
      %p111 = scmp.eq.s32.totalorder %s24, 0
      %p112 = por %p110, %p111
      %p113 = scmp.ne.s32.totalorder %s105, %s107
      %p114 = scmp.eq.s32.totalorder %s29, 1
      %p115 = por %p113, %p114
      %p116 = scmp.ne.s32.totalorder %s107, %s108
      %p117 = scmp.eq.s32.totalorder %s29, 0
      %p118 = por %p116, %p117
      %p119 = scmp.ne.s32.totalorder %s107, %s108
      %p120 = scmp.eq.s32.totalorder %s30, 1
      %p121 = por %p119, %p120
      %p123 = scmp.ne.s32.totalorder %s108, %s122
      %p124 = scmp.eq.s32.totalorder %s30, 0
      %p125 = por %p123, %p124
      %s127 = sadd.s32 %s126, 1
      %p130 = scmp.eq.s32.totalorder %s24, 1
      %p131 = scmp.ne.s32.totalorder %s126, %s128
      %p132 = scmp.eq.s32.totalorder %s24, 0
      %p133 = por %p131, %p132
      %p134 = scmp.ne.s32.totalorder %s126, %s128
      %p135 = scmp.eq.s32.totalorder %s29, 1
      %p136 = por %p134, %p135
      %p137 = scmp.ne.s32.totalorder %s128, %s129
      %p138 = scmp.eq.s32.totalorder %s29, 0
      %p139 = por %p137, %p138
      %p140 = scmp.ne.s32.totalorder %s128, %s129
      %p141 = scmp.eq.s32.totalorder %s30, 1
      %p142 = por %p140, %p141
      %p144 = scmp.ne.s32.totalorder %s129, %s143
      %p145 = scmp.eq.s32.totalorder %s30, 0
      %p146 = por %p144, %p145
      %s148 = sadd.s32 %s147, 1
      %p151 = scmp.eq.s32.totalorder %s24, 1
      %p152 = scmp.ne.s32.totalorder %s147, %s149
      %p153 = scmp.eq.s32.totalorder %s24, 0
      %p154 = por %p152, %p153
      %p155 = scmp.ne.s32.totalorder %s147, %s149
      %p156 = scmp.eq.s32.totalorder %s29, 1
      %p157 = por %p155, %p156
      %p158 = scmp.ne.s32.totalorder %s149, %s150
      %p159 = scmp.eq.s32.totalorder %s29, 0
      %p160 = por %p158, %p159
      %p161 = scmp.ne.s32.totalorder %s149, %s150
      %p162 = scmp.eq.s32.totalorder %s30, 1
      %p163 = por %p161, %p162
      %p165 = scmp.ne.s32.totalorder %s150, %s164
      %p166 = scmp.eq.s32.totalorder %s30, 0
      %p167 = por %p165, %p166
      %s169 = sadd.s32 %s168, 1
      %p172 = scmp.eq.s32.totalorder %s24, 1
      %p173 = scmp.ne.s32.totalorder %s168, %s170
      %p174 = scmp.eq.s32.totalorder %s24, 0
      %p175 = por %p173, %p174
      %p176 = scmp.ne.s32.totalorder %s168, %s170
      %p177 = scmp.eq.s32.totalorder %s29, 1
      %p178 = por %p176, %p177
      %p179 = scmp.ne.s32.totalorder %s170, %s171
      %p180 = scmp.eq.s32.totalorder %s29, 0
      %p181 = por %p179, %p180
      %p182 = scmp.ne.s32.totalorder %s170, %s171
      %p183 = scmp.eq.s32.totalorder %s30, 1
      %p184 = por %p182, %p183
      %p186 = scmp.ne.s32.totalorder %s171, %s185
      %p187 = scmp.eq.s32.totalorder %s30, 0
      %p188 = por %p186, %p187
      %s190 = sadd.s32 %s189, 1
      %p193 = scmp.eq.s32.totalorder %s24, 1
      %p194 = scmp.ne.s32.totalorder %s189, %s191
      %p195 = scmp.eq.s32.totalorder %s24, 0
      %p196 = por %p194, %p195
      %p197 = scmp.ne.s32.totalorder %s189, %s191
      %p198 = scmp.eq.s32.totalorder %s29, 1
      %p199 = por %p197, %p198
      %p200 = scmp.ne.s32.totalorder %s191, %s192
      %p201 = scmp.eq.s32.totalorder %s29, 0
      %p202 = por %p200, %p201
      %p203 = scmp.ne.s32.totalorder %s191, %s192
      %p204 = scmp.eq.s32.totalorder %s30, 1
      %p205 = por %p203, %p204
      %p207 = scmp.ne.s32.totalorder %s192, %s206
      %p208 = scmp.eq.s32.totalorder %s30, 0
      %p209 = por %p207, %p208
      %s211 = sadd.s32 %s210, 1
      %p214 = scmp.eq.s32.totalorder %s24, 1
      %p215 = scmp.ne.s32.totalorder %s210, %s212
      %p216 = scmp.eq.s32.totalorder %s24, 0
      %p217 = por %p215, %p216
      %p218 = scmp.ne.s32.totalorder %s210, %s212
      %p219 = scmp.eq.s32.totalorder %s29, 1
      %p220 = por %p218, %p219
      %p221 = scmp.ne.s32.totalorder %s212, %s213
      %p222 = scmp.eq.s32.totalorder %s29, 0
      %p223 = por %p221, %p222
      %p224 = scmp.ne.s32.totalorder %s212, %s213
      %p225 = scmp.eq.s32.totalorder %s30, 1
      %p226 = por %p224, %p225
      %p228 = scmp.ne.s32.totalorder %s213, %s227
      %p229 = scmp.eq.s32.totalorder %s30, 0
      %p230 = por %p228, %p229
      %s232 = sadd.s32 %s231, 1
      %p235 = scmp.eq.s32.totalorder %s24, 1
      %p236 = scmp.ne.s32.totalorder %s231, %s233
      %p237 = scmp.eq.s32.totalorder %s24, 0
      %p238 = por %p236, %p237
      %p239 = scmp.ne.s32.totalorder %s231, %s233
      %p240 = scmp.eq.s32.totalorder %s29, 1
      %p241 = por %p239, %p240
      %p242 = scmp.ne.s32.totalorder %s233, %s234
      %p243 = scmp.eq.s32.totalorder %s29, 0
      %p244 = por %p242, %p243
      %p245 = scmp.ne.s32.totalorder %s233, %s234
      %p246 = scmp.eq.s32.totalorder %s30, 1
      %p247 = por %p245, %p246
      %p249 = scmp.ne.s32.totalorder %s234, %s248
      %p250 = scmp.eq.s32.totalorder %s30, 0
      %p251 = por %p249, %p250
      %s252 = ssub.s32 %s24, %s31
      %p253 = scmp.eq.s32.totalorder %s252, 0
      %s255 = sadd.s32 %s254, 1
      %s256 = scalar_select %p253, %s254, %s255
      %p259 = pneg %p253
      %p260 = scmp.eq.s32.totalorder %s24, 1
      %p261 = por %p259, %p260
      %p262 = scmp.ne.s32.totalorder %s254, %s257
      %p263 = scmp.eq.s32.totalorder %s24, 0
      %p264 = por %p262, %p263
      %p265 = scmp.ne.s32.totalorder %s254, %s257
      %p266 = scmp.eq.s32.totalorder %s29, 1
      %p267 = por %p265, %p266
      %p268 = scmp.ne.s32.totalorder %s257, %s258
      %p269 = scmp.eq.s32.totalorder %s29, 0
      %p270 = por %p268, %p269
      %p271 = scmp.ne.s32.totalorder %s257, %s258
      %p272 = scmp.eq.s32.totalorder %s30, 1
      %p273 = por %p271, %p272
      %p275 = scmp.ne.s32.totalorder %s258, %s274
      %p276 = scmp.eq.s32.totalorder %s30, 0
      %p277 = por %p275, %p276
      %s278 = ssub.s32 %s24, %s31
      %p279 = scmp.eq.s32.totalorder %s278, 0
      %s281 = sadd.s32 %s280, 1
      %s282 = scalar_select %p279, %s280, %s281
      %p285 = pneg %p279
      %p286 = scmp.eq.s32.totalorder %s24, 1
      %p287 = por %p285, %p286
      %p288 = scmp.ne.s32.totalorder %s280, %s283
      %p289 = scmp.eq.s32.totalorder %s24, 0
      %p290 = por %p288, %p289
      %p291 = scmp.ne.s32.totalorder %s280, %s283
      %p292 = scmp.eq.s32.totalorder %s29, 1
      %p293 = por %p291, %p292
      %p294 = scmp.ne.s32.totalorder %s283, %s284
      %p295 = scmp.eq.s32.totalorder %s29, 0
      %p296 = por %p294, %p295
      %p297 = scmp.ne.s32.totalorder %s283, %s284
      %p298 = scmp.eq.s32.totalorder %s30, 1
      %p299 = por %p297, %p298
      %p301 = scmp.ne.s32.totalorder %s284, %s300
      %p302 = scmp.eq.s32.totalorder %s30, 0
      %p303 = por %p301, %p302
      %p304 = scmp.le.s32.totalorder 1, %s24
      %p305 = scmp.lt.s32.totalorder %s24, 3
      %p306 = pnand %p304, %p305
      %p307 = pneg %p306
      // Predicated region
      $region9: #{tpu_custom_call.1} parent=5 // pred_check
        _
      $region10: #{tpu_custom_call.1} parent=5 // pred_check_branch
        %309 = sbr.rel (%p306) target = $region12
      $region11: #{tpu_custom_call.1} parent=5 // pred_region
        %s310 = ssub.s32 %s24, 1
        // Predicated region
        $region13: #{tpu_custom_call.1} parent=11 // pred_check
          %p311 = pneg %p97
        $region14: #{tpu_custom_call.1} parent=11 // pred_check_branch
          %313 = sbr.rel (%p311) target = $region16
        $region15: #{tpu_custom_call.1} parent=11 // pred_region
          _
        $region16: #{tpu_custom_call.1} parent=11 // pred_fallthru
          _
        // Predicated region
        $region17: #{tpu_custom_call.1} parent=11 // pred_check
          %p314 = pneg %p118
        $region18: #{tpu_custom_call.1} parent=11 // pred_check_branch
          %316 = sbr.rel (%p314) target = $region20
        $region19: #{tpu_custom_call.1} parent=11 // pred_region
          _
        $region20: #{tpu_custom_call.1} parent=11 // pred_fallthru
          _
        // Predicated region
        $region21: #{tpu_custom_call.1} parent=11 // pred_check
          %p317 = pneg %p139
        $region22: #{tpu_custom_call.1} parent=11 // pred_check_branch
          %319 = sbr.rel (%p317) target = $region24
        $region23: #{tpu_custom_call.1} parent=11 // pred_region
          _
        $region24: #{tpu_custom_call.1} parent=11 // pred_fallthru
          _
        // Predicated region
        $region25: #{tpu_custom_call.1} parent=11 // pred_check
          %p320 = pneg %p160
        $region26: #{tpu_custom_call.1} parent=11 // pred_check_branch
          %322 = sbr.rel (%p320) target = $region28
        $region27: #{tpu_custom_call.1} parent=11 // pred_region
          _
        $region28: #{tpu_custom_call.1} parent=11 // pred_fallthru
          _
        // Predicated region
        $region29: #{tpu_custom_call.1} parent=11 // pred_check
          %p323 = pneg %p181
        $region30: #{tpu_custom_call.1} parent=11 // pred_check_branch
          %325 = sbr.rel (%p323) target = $region32
        $region31: #{tpu_custom_call.1} parent=11 // pred_region
          _
        $region32: #{tpu_custom_call.1} parent=11 // pred_fallthru
          _
        // Predicated region
        $region33: #{tpu_custom_call.1} parent=11 // pred_check
          %p326 = pneg %p202
        $region34: #{tpu_custom_call.1} parent=11 // pred_check_branch
          %328 = sbr.rel (%p326) target = $region36
        $region35: #{tpu_custom_call.1} parent=11 // pred_region
          _
        $region36: #{tpu_custom_call.1} parent=11 // pred_fallthru
          _
        // Predicated region
        $region37: #{tpu_custom_call.1} parent=11 // pred_check
          %p329 = pneg %p223
        $region38: #{tpu_custom_call.1} parent=11 // pred_check_branch
          %331 = sbr.rel (%p329) target = $region40
        $region39: #{tpu_custom_call.1} parent=11 // pred_region
          _
        $region40: #{tpu_custom_call.1} parent=11 // pred_fallthru
          _
        // Predicated region
        $region41: #{tpu_custom_call.1} parent=11 // pred_check
          %p332 = pneg %p244
        $region42: #{tpu_custom_call.1} parent=11 // pred_check_branch
          %334 = sbr.rel (%p332) target = $region44
        $region43: #{tpu_custom_call.1} parent=11 // pred_region
          _
        $region44: #{tpu_custom_call.1} parent=11 // pred_fallthru
          _
      $region12: #{tpu_custom_call.1} parent=5 // pred_fallthru
        _
      %p335 = scmp.lt.s32.totalorder %s24, 2
      // Predicated region
      $region45: #{tpu_custom_call.1} parent=5 // pred_check
        %p336 = pneg %p335
      $region46: #{tpu_custom_call.1} parent=5 // pred_check_branch
        %338 = sbr.rel (%p336) target = $region48
      $region47: #{tpu_custom_call.1} parent=5 // pred_region
        // Predicated region
        $region49: #{tpu_custom_call.1} parent=47 // pred_check
          %p339 = pneg %p44
        $region50: #{tpu_custom_call.1} parent=47 // pred_check_branch
          %341 = sbr.rel (%p339) target = $region52
        $region51: #{tpu_custom_call.1} parent=47 // pred_region
          %p342 = scmp.lt.s32.totalorder %s24, 1
          %s343 = scalar_select %p342, %s24, 1
          %s344 = smul.addr %s343, 4
          %s345 = scalar_lea.vmem %s0, %s344
        $region52: #{tpu_custom_call.1} parent=47 // pred_fallthru
          _
        // Predicated region
        $region53: #{tpu_custom_call.1} parent=47 // pred_check
          %p346 = pneg %p70
        $region54: #{tpu_custom_call.1} parent=47 // pred_check_branch
          %348 = sbr.rel (%p346) target = $region56
        $region55: #{tpu_custom_call.1} parent=47 // pred_region
          %p349 = scmp.lt.s32.totalorder %s24, 1
          %s350 = scalar_select %p349, %s24, 1
          %s351 = scalar_lea.vmem %s1, %s350
        $region56: #{tpu_custom_call.1} parent=47 // pred_fallthru
          _
      $region48: #{tpu_custom_call.1} parent=5 // pred_fallthru
        _
      %p352 = scmp.le.s32.totalorder 1, %s24
      %p353 = scmp.lt.s32.totalorder %s24, 3
      %p354 = pnand %p352, %p353
      %p355 = pneg %p354
      // Predicated region
      $region57: #{tpu_custom_call.1} parent=5 // pred_check
        _
      $region58: #{tpu_custom_call.1} parent=5 // pred_check_branch
        %357 = sbr.rel (%p354) target = $region60
      $region59: #{tpu_custom_call.1} parent=5 // pred_region
        %s358 = ssub.s32 %s24, 1
        %p359 = scmp.lt.s32.totalorder %s29, 1
        %s360 = scalar_select %p359, %s29, 1
        %s361 = smul.addr %s360, 4
        %s362 = scalar_lea.vmem %s0, %s361
        %p363 = pneg %p50
        %p364 = pneg %p47
        %p365 = scmp.lt.s32.totalorder %s29, 1
        %s366 = scalar_select %p365, %s29, 1
        %s367 = scalar_lea.vmem %s1, %s366
        %p368 = pneg %p76
        %p369 = pneg %p73
        %p370 = pneg %p97
        %p371 = pneg %p94
        %p372 = pneg %p118
        %p373 = pneg %p115
        %p374 = pneg %p139
        %p375 = pneg %p136
        %p376 = pneg %p160
        %p377 = pneg %p157
        %p378 = pneg %p181
        %p379 = pneg %p178
        %p380 = pneg %p202
        %p381 = pneg %p199
        %p382 = pneg %p223
        %p383 = pneg %p220
        %p384 = pneg %p244
        %p385 = pneg %p241
        %p386 = pneg %p270
        %p387 = pneg %p267
        %s388 = sand.u32 %s257, 1
        %s389 = scalar_lea.sflag [#allocation5], %s388
        %s390 = sand.u32 %s257, 1
        %s391 = smul.addr %s390, 4
        %s392 = scalar_lea.vmem [#allocation4], %s391
        %p393 = pneg %p296
        %p394 = pneg %p293
        %s395 = sand.u32 %s283, 1
        %s396 = scalar_lea.sflag [#allocation7], %s395
        %s397 = sand.u32 %s283, 1
        %s398 = scalar_lea.vmem [#allocation6], %s397
        %p399 = scmp.lt.s32.totalorder %s29, 1
        %s400 = scalar_select %p399, %s29, 1
        %s401 = smul.addr %s400, 4
        %s402 = scalar_lea.vmem %s0, %s401
        %p403 = scmp.lt.s32.totalorder %s29, 1
        %s404 = scalar_select %p403, %s29, 1
        %s405 = scalar_lea.vmem %s1, %s404
        %v406 = vld [vmem:[%s402] sm:$0xf]
        %v407 = vld [vmem:[%s405] sm:$0x1]
        %v408 = vld [vmem:[%s2] sm:$0xff]
        %v409 = vld [vmem:[%s2 + $0x8] sm:$0xff]
        %v410 = vld [vmem:[%s2 + $0x10] sm:$0xff]
        %v411 = vld [vmem:[%s2 + $0x18] sm:$0xff]
        %v412 = vld [vmem:[%s3] sm:$0xff]
        %v413 = vld [vmem:[%s3 + $0x8] sm:$0xff]
        %v414 = vld [vmem:[%s3 + $0x10] sm:$0xff]
        %v415 = vld [vmem:[%s3 + $0x18] sm:$0xff]
        %417 = vset.pattern.permute.xlu0 0
        %418 = vperm.xlu0 %417, %v412
        %v419 = vpop.permute.xlu0 %418
        %422 = vset.pattern.permute.xlu0 0
        %423 = vperm.xlu0 %422, %v413
        %v424 = vpop.permute.xlu0 %423
        %427 = vset.pattern.permute.xlu0 0
        %428 = vperm.xlu0 %427, %v414
        %v429 = vpop.permute.xlu0 %428
        %432 = vset.pattern.permute.xlu0 0
        %433 = vperm.xlu0 %432, %v415
        %v434 = vpop.permute.xlu0 %433
        %vm436 = vcmask 15360
        %v438 = vsel %vm436, %v408, 0
        %v441 = vsel %vm436, %v409, 0
        %v444 = vsel %vm436, %v410, 0
        %v447 = vsel %vm436, %v411, 0
        %vm449 = vcmask 1041408
        %v451 = vsel %vm449, %v406, 0
        %453 = vmatpush.msra.mxu0 0.0
        %454 = vmatpush.msra.mxu0 0.0
        %455 = vmatpush.msra.mxu0 0.0
        %456 = vmatpush.msra.mxu0 0.0
        %457 = vmatpush.msra.mxu0 0.0
        %458 = vmatpush.msra.mxu0 0.0
        %459 = vmatpush.msra.mxu0 0.0
        %460 = vmatpush.msra.mxu0 0.0
        %461 = vmatpush.msra.mxu0 0.0
        %462 = vmatpush.msra.mxu0 0.0
        %463 = vmatpush.msra.mxu0 0.0
        %464 = vmatpush.msra.mxu0 0.0
        %465 = vmatpush.msra.mxu0 0.0
        %466 = vmatpush.msra.mxu0 0.0
        %467 = vmatpush.msra.mxu0 0.0
        %468 = vmatpush.msra.mxu0 %v451
        %469 = vmatmul.f32.gmra.mxu0 %v438
        %v470 = vpop.f32.mrf.mxu0
        %v471 = vadd.f32 %v419, %v470
        %472 = vmatmul.f32.gmra.mxu0 %v441
        %v473 = vpop.f32.mrf.mxu0
        %v474 = vadd.f32 %v424, %v473
        %475 = vmatmul.f32.gmra.mxu0 %v444
        %v476 = vpop.f32.mrf.mxu0
        %v477 = vadd.f32 %v429, %v476
        %478 = vmatmul.f32.gmra.mxu0 %v447
        %v479 = vpop.f32.mrf.mxu0
        %v480 = vadd.f32 %v434, %v479
        %481 = vdwg.mxu0
        %v483 = vperm.slane %v407, 0
        %v485 = vmul.f32 %v471, %v483
        %v486 = vmul.f32 %v474, %v483
        %v487 = vmul.f32 %v477, %v483
        %v488 = vmul.f32 %v480, %v483
        %vm489 = vcmask 64512
        %490 = vst.msk [vmem:[#allocation2] sm:$0xff] %vm489, 0.0
        %491 = vst.msk [vmem:[#allocation2 + $0x10] sm:$0xff] %vm489, 0.0
        %492 = vst.msk [vmem:[#allocation2 + $0x20] sm:$0xff] %vm489, 0.0
        %493 = vst.msk [vmem:[#allocation2 + $0x30] sm:$0xff] %vm489, 0.0
        %vm494 = vcmask 130112
        %495 = vst.msk [vmem:[#allocation2 + $0x8] sm:$0xff] %vm494, 0.0
        %496 = vst.msk [vmem:[#allocation2 + $0x18] sm:$0xff] %vm494, 0.0
        %497 = vst.msk [vmem:[#allocation2 + $0x28] sm:$0xff] %vm494, 0.0
        %498 = vst.msk [vmem:[#allocation2 + $0x38] sm:$0xff] %vm494, 0.0
        %503 = vrot.lane.b32.xlu0 %v485, 8
        %v504 = vpop.permute.xlu0 %503
        %505 = vrot.lane.b32.xlu0 %v486, 8
        %v506 = vpop.permute.xlu0 %505
        %507 = vrot.lane.b32.xlu0 %v487, 8
        %v508 = vpop.permute.xlu0 %507
        %509 = vrot.lane.b32.xlu0 %v488, 8
        %v510 = vpop.permute.xlu0 %509
        %vm515 = vcmask 1047616
        %516 = vst.msk [vmem:[#allocation2] sm:$0xff] %vm515, %v504
        %517 = vst.msk [vmem:[#allocation2 + $0x8] sm:$0xff] %vm489, %v504
        %518 = vst.msk [vmem:[#allocation2 + $0x10] sm:$0xff] %vm515, %v506
        %519 = vst.msk [vmem:[#allocation2 + $0x18] sm:$0xff] %vm489, %v506
        %520 = vst.msk [vmem:[#allocation2 + $0x20] sm:$0xff] %vm515, %v508
        %521 = vst.msk [vmem:[#allocation2 + $0x28] sm:$0xff] %vm489, %v508
        %522 = vst.msk [vmem:[#allocation2 + $0x30] sm:$0xff] %vm515, %v510
        %523 = vst.msk [vmem:[#allocation2 + $0x38] sm:$0xff] %vm489, %v510
        %v524 = vld [vmem:[#allocation2] sm:$0xff]
        %v525 = vld [vmem:[#allocation2 + $0x8] sm:$0xff]
        %v526 = vld [vmem:[#allocation2 + $0x10] sm:$0xff]
        %v527 = vld [vmem:[#allocation2 + $0x18] sm:$0xff]
        %v528 = vld [vmem:[#allocation2 + $0x20] sm:$0xff]
        %v529 = vld [vmem:[#allocation2 + $0x28] sm:$0xff]
        %v530 = vld [vmem:[#allocation2 + $0x30] sm:$0xff]
        %v531 = vld [vmem:[#allocation2 + $0x38] sm:$0xff]
        %540 = vrot.lane.b32.xlu0 %v524, 121
        %v541 = vpop.permute.xlu0 %540
        %542 = vrot.lane.b32.xlu0 %v525, 121
        %v543 = vpop.permute.xlu0 %542
        %544 = vrot.lane.b32.xlu0 %v526, 121
        %v545 = vpop.permute.xlu0 %544
        %546 = vrot.lane.b32.xlu0 %v527, 121
        %v547 = vpop.permute.xlu0 %546
        %548 = vrot.lane.b32.xlu0 %v528, 121
        %v549 = vpop.permute.xlu0 %548
        %550 = vrot.lane.b32.xlu0 %v529, 121
        %v551 = vpop.permute.xlu0 %550
        %552 = vrot.lane.b32.xlu0 %v530, 121
        %v553 = vpop.permute.xlu0 %552
        %554 = vrot.lane.b32.xlu0 %v531, 121
        %v555 = vpop.permute.xlu0 %554
        %vm556 = vcmask 990208
        %v557 = vsel %vm556, %v541, %v543
        %v558 = vsel %vm556, %v545, %v547
        %v559 = vsel %vm556, %v549, %v551
        %v560 = vsel %vm556, %v553, %v555
        %565 = vst [vmem:[#allocation3] sm:$0xff] %v557
        %566 = vst [vmem:[#allocation3 + $0x8] sm:$0xff] %v558
        %567 = vst [vmem:[#allocation3 + $0x10] sm:$0xff] %v559
        %568 = vst [vmem:[#allocation3 + $0x18] sm:$0xff] %v560
        %v569 = vld [vmem:[#allocation2] sm:$0xff]
        %v570 = vld [vmem:[#allocation2 + $0x8] sm:$0xff]
        %v571 = vld [vmem:[#allocation2 + $0x10] sm:$0xff]
        %v572 = vld [vmem:[#allocation2 + $0x18] sm:$0xff]
        %v573 = vld [vmem:[#allocation2 + $0x20] sm:$0xff]
        %v574 = vld [vmem:[#allocation2 + $0x28] sm:$0xff]
        %v575 = vld [vmem:[#allocation2 + $0x30] sm:$0xff]
        %v576 = vld [vmem:[#allocation2 + $0x38] sm:$0xff]
        %585 = vrot.lane.b32.xlu0 %v569, 120
        %v586 = vpop.permute.xlu0 %585
        %587 = vrot.lane.b32.xlu0 %v570, 120
        %v588 = vpop.permute.xlu0 %587
        %589 = vrot.lane.b32.xlu0 %v571, 120
        %v590 = vpop.permute.xlu0 %589
        %591 = vrot.lane.b32.xlu0 %v572, 120
        %v592 = vpop.permute.xlu0 %591
        %593 = vrot.lane.b32.xlu0 %v573, 120
        %v594 = vpop.permute.xlu0 %593
        %595 = vrot.lane.b32.xlu0 %v574, 120
        %v596 = vpop.permute.xlu0 %595
        %597 = vrot.lane.b32.xlu0 %v575, 120
        %v598 = vpop.permute.xlu0 %597
        %599 = vrot.lane.b32.xlu0 %v576, 120
        %v600 = vpop.permute.xlu0 %599
        %vm601 = vcmask 982016
        %v602 = vsel %vm601, %v586, %v588
        %v603 = vsel %vm601, %v590, %v592
        %v604 = vsel %vm601, %v594, %v596
        %v605 = vsel %vm601, %v598, %v600
        %610 = vst [vmem:[#allocation3 + $0x20] sm:$0xff] %v602
        %611 = vst [vmem:[#allocation3 + $0x28] sm:$0xff] %v603
        %612 = vst [vmem:[#allocation3 + $0x30] sm:$0xff] %v604
        %613 = vst [vmem:[#allocation3 + $0x38] sm:$0xff] %v605
        %v614 = vld [vmem:[#allocation2] sm:$0xff]
        %v615 = vld [vmem:[#allocation2 + $0x8] sm:$0xff]
        %v616 = vld [vmem:[#allocation2 + $0x10] sm:$0xff]
        %v617 = vld [vmem:[#allocation2 + $0x18] sm:$0xff]
        %v618 = vld [vmem:[#allocation2 + $0x20] sm:$0xff]
        %v619 = vld [vmem:[#allocation2 + $0x28] sm:$0xff]
        %v620 = vld [vmem:[#allocation2 + $0x30] sm:$0xff]
        %v621 = vld [vmem:[#allocation2 + $0x38] sm:$0xff]
        %630 = vrot.lane.b32.xlu0 %v614, 119
        %v631 = vpop.permute.xlu0 %630
        %632 = vrot.lane.b32.xlu0 %v615, 119
        %v633 = vpop.permute.xlu0 %632
        %634 = vrot.lane.b32.xlu0 %v616, 119
        %v635 = vpop.permute.xlu0 %634
        %636 = vrot.lane.b32.xlu0 %v617, 119
        %v637 = vpop.permute.xlu0 %636
        %638 = vrot.lane.b32.xlu0 %v618, 119
        %v639 = vpop.permute.xlu0 %638
        %640 = vrot.lane.b32.xlu0 %v619, 119
        %v641 = vpop.permute.xlu0 %640
        %642 = vrot.lane.b32.xlu0 %v620, 119
        %v643 = vpop.permute.xlu0 %642
        %644 = vrot.lane.b32.xlu0 %v621, 119
        %v645 = vpop.permute.xlu0 %644
        %vm646 = vcmask 973824
        %v647 = vsel %vm646, %v631, %v633
        %v648 = vsel %vm646, %v635, %v637
        %v649 = vsel %vm646, %v639, %v641
        %v650 = vsel %vm646, %v643, %v645
        %655 = vst [vmem:[#allocation3 + $0x40] sm:$0xff] %v647
        %656 = vst [vmem:[#allocation3 + $0x48] sm:$0xff] %v648
        %657 = vst [vmem:[#allocation3 + $0x50] sm:$0xff] %v649
        %658 = vst [vmem:[#allocation3 + $0x58] sm:$0xff] %v650
        %v659 = vld [vmem:[%s4] sm:$0xff]
        %v660 = vld [vmem:[%s4 + $0x8] sm:$0xff]
        %v661 = vld [vmem:[%s4 + $0x10] sm:$0xff]
        %v662 = vld [vmem:[%s4 + $0x18] sm:$0xff]
        %v663 = vld [vmem:[%s4 + $0x20] sm:$0xff]
        %v664 = vld [vmem:[%s4 + $0x28] sm:$0xff]
        %v665 = vld [vmem:[%s4 + $0x30] sm:$0xff]
        %v666 = vld [vmem:[%s4 + $0x38] sm:$0xff]
        %v667 = vld [vmem:[#allocation3] sm:$0xff]
        %v668 = vld [vmem:[#allocation3 + $0x8] sm:$0xff]
        %v669 = vld [vmem:[#allocation3 + $0x10] sm:$0xff]
        %v670 = vld [vmem:[#allocation3 + $0x18] sm:$0xff]
        %v671 = vld [vmem:[#allocation3 + $0x20] sm:$0xff]
        %v672 = vld [vmem:[#allocation3 + $0x28] sm:$0xff]
        %v673 = vld [vmem:[#allocation3 + $0x30] sm:$0xff]
        %v674 = vld [vmem:[#allocation3 + $0x38] sm:$0xff]
        %v675 = vld [vmem:[#allocation3 + $0x40] sm:$0xff]
        %v676 = vld [vmem:[#allocation3 + $0x48] sm:$0xff]
        %v677 = vld [vmem:[#allocation3 + $0x50] sm:$0xff]
        %v678 = vld [vmem:[#allocation3 + $0x58] sm:$0xff]
        %v679 = vld [vmem:[%s5] sm:$0xff]
        %v680 = vld [vmem:[%s5 + $0x8] sm:$0xff]
        %v681 = vld [vmem:[%s5 + $0x10] sm:$0xff]
        %v682 = vld [vmem:[%s5 + $0x18] sm:$0xff]
        %v683 = vld [vmem:[%s5 + $0x20] sm:$0xff]
        %v684 = vld [vmem:[%s5 + $0x28] sm:$0xff]
        %v685 = vld [vmem:[%s5 + $0x30] sm:$0xff]
        %v686 = vld [vmem:[%s5 + $0x38] sm:$0xff]
        %688 = vset.pattern.permute.xlu0 0
        %689 = vperm.xlu0 %688, %v679
        %v690 = vpop.permute.xlu0 %689
        %693 = vset.pattern.permute.xlu0 0
        %694 = vperm.xlu0 %693, %v680
        %v695 = vpop.permute.xlu0 %694
        %698 = vset.pattern.permute.xlu0 0
        %699 = vperm.xlu0 %698, %v681
        %v700 = vpop.permute.xlu0 %699
        %703 = vset.pattern.permute.xlu0 0
        %704 = vperm.xlu0 %703, %v682
        %v705 = vpop.permute.xlu0 %704
        %708 = vset.pattern.permute.xlu0 0
        %709 = vperm.xlu0 %708, %v683
        %v710 = vpop.permute.xlu0 %709
        %713 = vset.pattern.permute.xlu0 0
        %714 = vperm.xlu0 %713, %v684
        %v715 = vpop.permute.xlu0 %714
        %718 = vset.pattern.permute.xlu0 0
        %719 = vperm.xlu0 %718, %v685
        %v720 = vpop.permute.xlu0 %719
        %723 = vset.pattern.permute.xlu0 0
        %724 = vperm.xlu0 %723, %v686
        %v725 = vpop.permute.xlu0 %724
        %vm727 = vcmask 785408
        %v729 = vsel %vm727, %v659, 0
        %v732 = vsel %vm727, %v660, 0
        %v735 = vsel %vm727, %v661, 0
        %v738 = vsel %vm727, %v662, 0
        %v741 = vsel %vm727, %v663, 0
        %v744 = vsel %vm727, %v664, 0
        %v747 = vsel %vm727, %v665, 0
        %v750 = vsel %vm727, %v666, 0
        %752 = vmatpush.msra.mxu0 0.0
        %753 = vmatpush.msra.mxu0 0.0
        %754 = vmatpush.msra.mxu0 0.0
        %755 = vmatpush.msra.mxu0 0.0
        %756 = vmatpush.msra.mxu0 %v678
        %757 = vmatpush.msra.mxu0 %v677
        %758 = vmatpush.msra.mxu0 %v676
        %759 = vmatpush.msra.mxu0 %v675
        %760 = vmatpush.msra.mxu0 %v674
        %761 = vmatpush.msra.mxu0 %v673
        %762 = vmatpush.msra.mxu0 %v672
        %763 = vmatpush.msra.mxu0 %v671
        %764 = vmatpush.msra.mxu0 %v670
        %765 = vmatpush.msra.mxu0 %v669
        %766 = vmatpush.msra.mxu0 %v668
        %767 = vmatpush.msra.mxu0 %v667
        %768 = vmatmul.f32.gmra.mxu0 %v729
        %v769 = vpop.f32.mrf.mxu0
        %v770 = vadd.f32 %v690, %v769
        %771 = vmatmul.f32.gmra.mxu0 %v732
        %v772 = vpop.f32.mrf.mxu0
        %v773 = vadd.f32 %v695, %v772
        %774 = vmatmul.f32.gmra.mxu0 %v735
        %v775 = vpop.f32.mrf.mxu0
        %v776 = vadd.f32 %v700, %v775
        %777 = vmatmul.f32.gmra.mxu0 %v738
        %v778 = vpop.f32.mrf.mxu0
        %v779 = vadd.f32 %v705, %v778
        %780 = vmatmul.f32.gmra.mxu0 %v741
        %v781 = vpop.f32.mrf.mxu0
        %v782 = vadd.f32 %v710, %v781
        %783 = vmatmul.f32.gmra.mxu0 %v744
        %v784 = vpop.f32.mrf.mxu0
        %v785 = vadd.f32 %v715, %v784
        %786 = vmatmul.f32.gmra.mxu0 %v747
        %v787 = vpop.f32.mrf.mxu0
        %v788 = vadd.f32 %v720, %v787
        %789 = vmatmul.f32.gmra.mxu0 %v750
        %v790 = vpop.f32.mrf.mxu0
        %v791 = vadd.f32 %v725, %v790
        %792 = vdwg.mxu0
        %v793 = vtanh.pop %v770
        %v794 = vtanh.pop %v773
        %v795 = vtanh.pop %v776
        %v796 = vtanh.pop %v779
        %v797 = vxor.u32 %v782, 2147483648
        %v798 = vxor.u32 %v785, 2147483648
        %v799 = vxor.u32 %v788, 2147483648
        %v800 = vxor.u32 %v791, 2147483648
        %v801 = vmul.f32 %v797, 1.442695
        %v802 = vpow.pop %v801
        %v803 = vmul.f32 %v798, 1.442695
        %v804 = vpow.pop %v803
        %v805 = vmul.f32 %v799, 1.442695
        %v806 = vpow.pop %v805
        %v807 = vmul.f32 %v800, 1.442695
        %v808 = vpow.pop %v807
        %v809 = vadd.f32 %v802, 1.0
        %v810 = vadd.f32 %v804, 1.0
        %v811 = vadd.f32 %v806, 1.0
        %v812 = vadd.f32 %v808, 1.0
        %v813 = vrcp.pop %v809
        %v814 = vmul.f32 %v809, %v813
        %v815 = vsub.f32 1.0, %v814
        %v816 = vmul.f32 %v813, %v815
        %v817 = vadd.f32 %v813, %v816
        %vm818 = vweird.f32 %v809
        %vm819 = vweird.f32 %v813
        %vm820 = vmor %vm818, %vm819
        %v821 = vsel %vm820, %v813, %v817
        %v822 = vand.u32 2147483647, %v809
        %vm823 = vcmp.eq.f32.partialorder %v822, 8.507059e+37
        %v824 = vand.u32 %v809, 2147483648
        %v825 = vor.u32 1.1754944e-38, %v824
        %v826 = vsel %vm823, %v825, %v821
        %v827 = vmul.f32 1.0, %v826
        %v828 = vrcp.pop %v810
        %v829 = vmul.f32 %v810, %v828
        %v830 = vsub.f32 1.0, %v829
        %v831 = vmul.f32 %v828, %v830
        %v832 = vadd.f32 %v828, %v831
        %vm833 = vweird.f32 %v810
        %vm834 = vweird.f32 %v828
        %vm835 = vmor %vm833, %vm834
        %v836 = vsel %vm835, %v828, %v832
        %v837 = vand.u32 2147483647, %v810
        %vm838 = vcmp.eq.f32.partialorder %v837, 8.507059e+37
        %v839 = vand.u32 %v810, 2147483648
        %v840 = vor.u32 1.1754944e-38, %v839
        %v841 = vsel %vm838, %v840, %v836
        %v842 = vmul.f32 1.0, %v841
        %v843 = vrcp.pop %v811
        %v844 = vmul.f32 %v811, %v843
        %v845 = vsub.f32 1.0, %v844
        %v846 = vmul.f32 %v843, %v845
        %v847 = vadd.f32 %v843, %v846
        %vm848 = vweird.f32 %v811
        %vm849 = vweird.f32 %v843
        %vm850 = vmor %vm848, %vm849
        %v851 = vsel %vm850, %v843, %v847
        %v852 = vand.u32 2147483647, %v811
        %vm853 = vcmp.eq.f32.partialorder %v852, 8.507059e+37
        %v854 = vand.u32 %v811, 2147483648
        %v855 = vor.u32 1.1754944e-38, %v854
        %v856 = vsel %vm853, %v855, %v851
        %v857 = vmul.f32 1.0, %v856
        %v858 = vrcp.pop %v812
        %v859 = vmul.f32 %v812, %v858
        %v860 = vsub.f32 1.0, %v859
        %v861 = vmul.f32 %v858, %v860
        %v862 = vadd.f32 %v858, %v861
        %vm863 = vweird.f32 %v812
        %vm864 = vweird.f32 %v858
        %vm865 = vmor %vm863, %vm864
        %v866 = vsel %vm865, %v858, %v862
        %v867 = vand.u32 2147483647, %v812
        %vm868 = vcmp.eq.f32.partialorder %v867, 8.507059e+37
        %v869 = vand.u32 %v812, 2147483648
        %v870 = vor.u32 1.1754944e-38, %v869
        %v871 = vsel %vm868, %v870, %v866
        %v872 = vmul.f32 1.0, %v871
        %v873 = vmul.f32 %v793, %v827
        %v874 = vmul.f32 %v794, %v842
        %v875 = vmul.f32 %v795, %v857
        %v876 = vmul.f32 %v796, %v872
        %v877 = vld [vmem:[%s6] sm:$0xff]
        %v878 = vld [vmem:[%s6 + $0x8] sm:$0xff]
        %v879 = vld [vmem:[%s6 + $0x10] sm:$0xff]
        %v880 = vld [vmem:[%s6 + $0x18] sm:$0xff]
        %v881 = vld [vmem:[%s6 + $0x20] sm:$0xff]
        %v882 = vld [vmem:[%s6 + $0x28] sm:$0xff]
        %v883 = vld [vmem:[%s6 + $0x30] sm:$0xff]
        %v884 = vld [vmem:[%s6 + $0x38] sm:$0xff]
        %v885 = vld [vmem:[%s7] sm:$0xff]
        %v886 = vld [vmem:[%s7 + $0x8] sm:$0xff]
        %v887 = vld [vmem:[%s7 + $0x10] sm:$0xff]
        %v888 = vld [vmem:[%s7 + $0x18] sm:$0xff]
        %v889 = vld [vmem:[%s7 + $0x20] sm:$0xff]
        %v890 = vld [vmem:[%s7 + $0x28] sm:$0xff]
        %v891 = vld [vmem:[%s7 + $0x30] sm:$0xff]
        %v892 = vld [vmem:[%s7 + $0x38] sm:$0xff]
        %894 = vset.pattern.permute.xlu0 0
        %895 = vperm.xlu0 %894, %v885
        %v896 = vpop.permute.xlu0 %895
        %899 = vset.pattern.permute.xlu0 0
        %900 = vperm.xlu0 %899, %v886
        %v901 = vpop.permute.xlu0 %900
        %904 = vset.pattern.permute.xlu0 0
        %905 = vperm.xlu0 %904, %v887
        %v906 = vpop.permute.xlu0 %905
        %909 = vset.pattern.permute.xlu0 0
        %910 = vperm.xlu0 %909, %v888
        %v911 = vpop.permute.xlu0 %910
        %914 = vset.pattern.permute.xlu0 0
        %915 = vperm.xlu0 %914, %v889
        %v916 = vpop.permute.xlu0 %915
        %919 = vset.pattern.permute.xlu0 0
        %920 = vperm.xlu0 %919, %v890
        %v921 = vpop.permute.xlu0 %920
        %924 = vset.pattern.permute.xlu0 0
        %925 = vperm.xlu0 %924, %v891
        %v926 = vpop.permute.xlu0 %925
        %929 = vset.pattern.permute.xlu0 0
        %930 = vperm.xlu0 %929, %v892
        %v931 = vpop.permute.xlu0 %930
        %vm933 = vcmask 261120
        %v935 = vsel %vm933, %v877, 0
        %v938 = vsel %vm933, %v878, 0
        %v941 = vsel %vm933, %v879, 0
        %v944 = vsel %vm933, %v880, 0
        %v947 = vsel %vm933, %v881, 0
        %v950 = vsel %vm933, %v882, 0
        %v953 = vsel %vm933, %v883, 0
        %v956 = vsel %vm933, %v884, 0
        %958 = vmatpush.msra.mxu0 0.0
        %959 = vmatpush.msra.mxu0 0.0
        %960 = vmatpush.msra.mxu0 0.0
        %961 = vmatpush.msra.mxu0 0.0
        %962 = vmatpush.msra.mxu0 0.0
        %963 = vmatpush.msra.mxu0 0.0
        %964 = vmatpush.msra.mxu0 0.0
        %965 = vmatpush.msra.mxu0 0.0
        %966 = vmatpush.msra.mxu0 0.0
        %967 = vmatpush.msra.mxu0 0.0
        %968 = vmatpush.msra.mxu0 0.0
        %969 = vmatpush.msra.mxu0 0.0
        %970 = vmatpush.msra.mxu0 %v876
        %971 = vmatpush.msra.mxu0 %v875
        %972 = vmatpush.msra.mxu0 %v874
        %973 = vmatpush.msra.mxu0 %v873
        %974 = vmatmul.f32.gmra.mxu0 %v935
        %v975 = vpop.f32.mrf.mxu0
        %v976 = vadd.f32 %v896, %v975
        %977 = vmatmul.f32.gmra.mxu0 %v938
        %v978 = vpop.f32.mrf.mxu0
        %v979 = vadd.f32 %v901, %v978
        %980 = vmatmul.f32.gmra.mxu0 %v941
        %v981 = vpop.f32.mrf.mxu0
        %v982 = vadd.f32 %v906, %v981
        %983 = vmatmul.f32.gmra.mxu0 %v944
        %v984 = vpop.f32.mrf.mxu0
        %v985 = vadd.f32 %v911, %v984
        %986 = vmatmul.f32.gmra.mxu0 %v947
        %v987 = vpop.f32.mrf.mxu0
        %v988 = vadd.f32 %v916, %v987
        %989 = vmatmul.f32.gmra.mxu0 %v950
        %v990 = vpop.f32.mrf.mxu0
        %v991 = vadd.f32 %v921, %v990
        %992 = vmatmul.f32.gmra.mxu0 %v953
        %v993 = vpop.f32.mrf.mxu0
        %v994 = vadd.f32 %v926, %v993
        %995 = vmatmul.f32.gmra.mxu0 %v956
        %v996 = vpop.f32.mrf.mxu0
        %v997 = vadd.f32 %v931, %v996
        %998 = vdwg.mxu0
        %v999 = vadd.f32 %v485, %v976
        %v1000 = vadd.f32 %v486, %v979
        %v1001 = vadd.f32 %v487, %v982
        %v1002 = vadd.f32 %v488, %v985
        %v1003 = vmul.f32 %v999, %v483
        %v1004 = vmul.f32 %v1000, %v483
        %v1005 = vmul.f32 %v1001, %v483
        %v1006 = vmul.f32 %v1002, %v483
        %v1007 = vadd.f32 %v988, 0.0
        %v1008 = vadd.f32 %v991, 0.0
        %v1009 = vadd.f32 %v994, 0.0
        %v1010 = vadd.f32 %v997, 0.0
        %1015 = vrot.lane.b32.xlu0 %v1003, 8
        %v1016 = vpop.permute.xlu0 %1015
        %1017 = vrot.lane.b32.xlu0 %v1004, 8
        %v1018 = vpop.permute.xlu0 %1017
        %1019 = vrot.lane.b32.xlu0 %v1005, 8
        %v1020 = vpop.permute.xlu0 %1019
        %1021 = vrot.lane.b32.xlu0 %v1006, 8
        %v1022 = vpop.permute.xlu0 %1021
        %1027 = vst.msk [vmem:[#allocation2] sm:$0xff] %vm515, %v1016
        %1028 = vst.msk [vmem:[#allocation2 + $0x8] sm:$0xff] %vm489, %v1016
        %1029 = vst.msk [vmem:[#allocation2 + $0x10] sm:$0xff] %vm515, %v1018
        %1030 = vst.msk [vmem:[#allocation2 + $0x18] sm:$0xff] %vm489, %v1018
        %1031 = vst.msk [vmem:[#allocation2 + $0x20] sm:$0xff] %vm515, %v1020
        %1032 = vst.msk [vmem:[#allocation2 + $0x28] sm:$0xff] %vm489, %v1020
        %1033 = vst.msk [vmem:[#allocation2 + $0x30] sm:$0xff] %vm515, %v1022
        %1034 = vst.msk [vmem:[#allocation2 + $0x38] sm:$0xff] %vm489, %v1022
        %v1035 = vld [vmem:[#allocation2] sm:$0xff]
        %v1036 = vld [vmem:[#allocation2 + $0x8] sm:$0xff]
        %v1037 = vld [vmem:[#allocation2 + $0x10] sm:$0xff]
        %v1038 = vld [vmem:[#allocation2 + $0x18] sm:$0xff]
        %v1039 = vld [vmem:[#allocation2 + $0x20] sm:$0xff]
        %v1040 = vld [vmem:[#allocation2 + $0x28] sm:$0xff]
        %v1041 = vld [vmem:[#allocation2 + $0x30] sm:$0xff]
        %v1042 = vld [vmem:[#allocation2 + $0x38] sm:$0xff]
        %1051 = vrot.lane.b32.xlu0 %v1035, 122
        %v1052 = vpop.permute.xlu0 %1051
        %1053 = vrot.lane.b32.xlu0 %v1036, 122
        %v1054 = vpop.permute.xlu0 %1053
        %1055 = vrot.lane.b32.xlu0 %v1037, 122
        %v1056 = vpop.permute.xlu0 %1055
        %1057 = vrot.lane.b32.xlu0 %v1038, 122
        %v1058 = vpop.permute.xlu0 %1057
        %1059 = vrot.lane.b32.xlu0 %v1039, 122
        %v1060 = vpop.permute.xlu0 %1059
        %1061 = vrot.lane.b32.xlu0 %v1040, 122
        %v1062 = vpop.permute.xlu0 %1061
        %1063 = vrot.lane.b32.xlu0 %v1041, 122
        %v1064 = vpop.permute.xlu0 %1063
        %1065 = vrot.lane.b32.xlu0 %v1042, 122
        %v1066 = vpop.permute.xlu0 %1065
        %vm1067 = vcmask 998400
        %v1068 = vsel %vm1067, %v1052, %v1054
        %v1069 = vsel %vm1067, %v1056, %v1058
        %v1070 = vsel %vm1067, %v1060, %v1062
        %v1071 = vsel %vm1067, %v1064, %v1066
        %1076 = vst [vmem:[#allocation3] sm:$0xff] %v1068
        %1077 = vst [vmem:[#allocation3 + $0x8] sm:$0xff] %v1069
        %1078 = vst [vmem:[#allocation3 + $0x10] sm:$0xff] %v1070
        %1079 = vst [vmem:[#allocation3 + $0x18] sm:$0xff] %v1071
        %v1080 = vld [vmem:[#allocation2] sm:$0xff]
        %v1081 = vld [vmem:[#allocation2 + $0x8] sm:$0xff]
        %v1082 = vld [vmem:[#allocation2 + $0x10] sm:$0xff]
        %v1083 = vld [vmem:[#allocation2 + $0x18] sm:$0xff]
        %v1084 = vld [vmem:[#allocation2 + $0x20] sm:$0xff]
        %v1085 = vld [vmem:[#allocation2 + $0x28] sm:$0xff]
        %v1086 = vld [vmem:[#allocation2 + $0x30] sm:$0xff]
        %v1087 = vld [vmem:[#allocation2 + $0x38] sm:$0xff]
        %1096 = vrot.lane.b32.xlu0 %v1080, 120
        %v1097 = vpop.permute.xlu0 %1096
        %1098 = vrot.lane.b32.xlu0 %v1081, 120
        %v1099 = vpop.permute.xlu0 %1098
        %1100 = vrot.lane.b32.xlu0 %v1082, 120
        %v1101 = vpop.permute.xlu0 %1100
        %1102 = vrot.lane.b32.xlu0 %v1083, 120
        %v1103 = vpop.permute.xlu0 %1102
        %1104 = vrot.lane.b32.xlu0 %v1084, 120
        %v1105 = vpop.permute.xlu0 %1104
        %1106 = vrot.lane.b32.xlu0 %v1085, 120
        %v1107 = vpop.permute.xlu0 %1106
        %1108 = vrot.lane.b32.xlu0 %v1086, 120
        %v1109 = vpop.permute.xlu0 %1108
        %1110 = vrot.lane.b32.xlu0 %v1087, 120
        %v1111 = vpop.permute.xlu0 %1110
        %v1112 = vsel %vm601, %v1097, %v1099
        %v1113 = vsel %vm601, %v1101, %v1103
        %v1114 = vsel %vm601, %v1105, %v1107
        %v1115 = vsel %vm601, %v1109, %v1111
        %1120 = vst [vmem:[#allocation3 + $0x20] sm:$0xff] %v1112
        %1121 = vst [vmem:[#allocation3 + $0x28] sm:$0xff] %v1113
        %1122 = vst [vmem:[#allocation3 + $0x30] sm:$0xff] %v1114
        %1123 = vst [vmem:[#allocation3 + $0x38] sm:$0xff] %v1115
        %v1124 = vld [vmem:[#allocation2] sm:$0xff]
        %v1125 = vld [vmem:[#allocation2 + $0x8] sm:$0xff]
        %v1126 = vld [vmem:[#allocation2 + $0x10] sm:$0xff]
        %v1127 = vld [vmem:[#allocation2 + $0x18] sm:$0xff]
        %v1128 = vld [vmem:[#allocation2 + $0x20] sm:$0xff]
        %v1129 = vld [vmem:[#allocation2 + $0x28] sm:$0xff]
        %v1130 = vld [vmem:[#allocation2 + $0x30] sm:$0xff]
        %v1131 = vld [vmem:[#allocation2 + $0x38] sm:$0xff]
        %1140 = vrot.lane.b32.xlu0 %v1124, 118
        %v1141 = vpop.permute.xlu0 %1140
        %1142 = vrot.lane.b32.xlu0 %v1125, 118
        %v1143 = vpop.permute.xlu0 %1142
        %1144 = vrot.lane.b32.xlu0 %v1126, 118
        %v1145 = vpop.permute.xlu0 %1144
        %1146 = vrot.lane.b32.xlu0 %v1127, 118
        %v1147 = vpop.permute.xlu0 %1146
        %1148 = vrot.lane.b32.xlu0 %v1128, 118
        %v1149 = vpop.permute.xlu0 %1148
        %1150 = vrot.lane.b32.xlu0 %v1129, 118
        %v1151 = vpop.permute.xlu0 %1150
        %1152 = vrot.lane.b32.xlu0 %v1130, 118
        %v1153 = vpop.permute.xlu0 %1152
        %1154 = vrot.lane.b32.xlu0 %v1131, 118
        %v1155 = vpop.permute.xlu0 %1154
        %vm1156 = vcmask 965632
        %v1157 = vsel %vm1156, %v1141, %v1143
        %v1158 = vsel %vm1156, %v1145, %v1147
        %v1159 = vsel %vm1156, %v1149, %v1151
        %v1160 = vsel %vm1156, %v1153, %v1155
        %1165 = vst [vmem:[#allocation3 + $0x40] sm:$0xff] %v1157
        %1166 = vst [vmem:[#allocation3 + $0x48] sm:$0xff] %v1158
        %1167 = vst [vmem:[#allocation3 + $0x50] sm:$0xff] %v1159
        %1168 = vst [vmem:[#allocation3 + $0x58] sm:$0xff] %v1160
        %s1169 = scalar_lea.vmem %s4, 64
        %v1170 = vld [vmem:[%s1169] sm:$0xff]
        %v1171 = vld [vmem:[%s1169 + $0x8] sm:$0xff]
        %v1172 = vld [vmem:[%s1169 + $0x10] sm:$0xff]
        %v1173 = vld [vmem:[%s1169 + $0x18] sm:$0xff]
        %v1174 = vld [vmem:[%s1169 + $0x20] sm:$0xff]
        %v1175 = vld [vmem:[%s1169 + $0x28] sm:$0xff]
        %v1176 = vld [vmem:[%s1169 + $0x30] sm:$0xff]
        %v1177 = vld [vmem:[%s1169 + $0x38] sm:$0xff]
        %v1178 = vld [vmem:[#allocation3] sm:$0xff]
        %v1179 = vld [vmem:[#allocation3 + $0x8] sm:$0xff]
        %v1180 = vld [vmem:[#allocation3 + $0x10] sm:$0xff]
        %v1181 = vld [vmem:[#allocation3 + $0x18] sm:$0xff]
        %v1182 = vld [vmem:[#allocation3 + $0x20] sm:$0xff]
        %v1183 = vld [vmem:[#allocation3 + $0x28] sm:$0xff]
        %v1184 = vld [vmem:[#allocation3 + $0x30] sm:$0xff]
        %v1185 = vld [vmem:[#allocation3 + $0x38] sm:$0xff]
        %v1186 = vld [vmem:[#allocation3 + $0x40] sm:$0xff]
        %v1187 = vld [vmem:[#allocation3 + $0x48] sm:$0xff]
        %v1188 = vld [vmem:[#allocation3 + $0x50] sm:$0xff]
        %v1189 = vld [vmem:[#allocation3 + $0x58] sm:$0xff]
        %s1190 = scalar_lea.vmem %s5, 64
        %v1191 = vld [vmem:[%s1190] sm:$0xff]
        %v1192 = vld [vmem:[%s1190 + $0x8] sm:$0xff]
        %v1193 = vld [vmem:[%s1190 + $0x10] sm:$0xff]
        %v1194 = vld [vmem:[%s1190 + $0x18] sm:$0xff]
        %v1195 = vld [vmem:[%s1190 + $0x20] sm:$0xff]
        %v1196 = vld [vmem:[%s1190 + $0x28] sm:$0xff]
        %v1197 = vld [vmem:[%s1190 + $0x30] sm:$0xff]
        %v1198 = vld [vmem:[%s1190 + $0x38] sm:$0xff]
        %1200 = vset.pattern.permute.xlu0 0
        %1201 = vperm.xlu0 %1200, %v1191
        %v1202 = vpop.permute.xlu0 %1201
        %1205 = vset.pattern.permute.xlu0 0
        %1206 = vperm.xlu0 %1205, %v1192
        %v1207 = vpop.permute.xlu0 %1206
        %1210 = vset.pattern.permute.xlu0 0
        %1211 = vperm.xlu0 %1210, %v1193
        %v1212 = vpop.permute.xlu0 %1211
        %1215 = vset.pattern.permute.xlu0 0
        %1216 = vperm.xlu0 %1215, %v1194
        %v1217 = vpop.permute.xlu0 %1216
        %1220 = vset.pattern.permute.xlu0 0
        %1221 = vperm.xlu0 %1220, %v1195
        %v1222 = vpop.permute.xlu0 %1221
        %1225 = vset.pattern.permute.xlu0 0
        %1226 = vperm.xlu0 %1225, %v1196
        %v1227 = vpop.permute.xlu0 %1226
        %1230 = vset.pattern.permute.xlu0 0
        %1231 = vperm.xlu0 %1230, %v1197
        %v1232 = vpop.permute.xlu0 %1231
        %1235 = vset.pattern.permute.xlu0 0
        %1236 = vperm.xlu0 %1235, %v1198
        %v1237 = vpop.permute.xlu0 %1236
        %v1240 = vsel %vm727, %v1170, 0
        %v1243 = vsel %vm727, %v1171, 0
        %v1246 = vsel %vm727, %v1172, 0
        %v1249 = vsel %vm727, %v1173, 0
        %v1252 = vsel %vm727, %v1174, 0
        %v1255 = vsel %vm727, %v1175, 0
        %v1258 = vsel %vm727, %v1176, 0
        %v1261 = vsel %vm727, %v1177, 0
        %1263 = vmatpush.msra.mxu0 0.0
        %1264 = vmatpush.msra.mxu0 0.0
        %1265 = vmatpush.msra.mxu0 0.0
        %1266 = vmatpush.msra.mxu0 0.0
        %1267 = vmatpush.msra.mxu0 %v1189
        %1268 = vmatpush.msra.mxu0 %v1188
        %1269 = vmatpush.msra.mxu0 %v1187
        %1270 = vmatpush.msra.mxu0 %v1186
        %1271 = vmatpush.msra.mxu0 %v1185
        %1272 = vmatpush.msra.mxu0 %v1184
        %1273 = vmatpush.msra.mxu0 %v1183
        %1274 = vmatpush.msra.mxu0 %v1182
        %1275 = vmatpush.msra.mxu0 %v1181
        %1276 = vmatpush.msra.mxu0 %v1180
        %1277 = vmatpush.msra.mxu0 %v1179
        %1278 = vmatpush.msra.mxu0 %v1178
        %1279 = vmatmul.f32.gmra.mxu0 %v1240
        %v1280 = vpop.f32.mrf.mxu0
        %v1281 = vadd.f32 %v1202, %v1280
        %1282 = vmatmul.f32.gmra.mxu0 %v1243
        %v1283 = vpop.f32.mrf.mxu0
        %v1284 = vadd.f32 %v1207, %v1283
        %1285 = vmatmul.f32.gmra.mxu0 %v1246
        %v1286 = vpop.f32.mrf.mxu0
        %v1287 = vadd.f32 %v1212, %v1286
        %1288 = vmatmul.f32.gmra.mxu0 %v1249
        %v1289 = vpop.f32.mrf.mxu0
        %v1290 = vadd.f32 %v1217, %v1289
        %1291 = vmatmul.f32.gmra.mxu0 %v1252
        %v1292 = vpop.f32.mrf.mxu0
        %v1293 = vadd.f32 %v1222, %v1292
        %1294 = vmatmul.f32.gmra.mxu0 %v1255
        %v1295 = vpop.f32.mrf.mxu0
        %v1296 = vadd.f32 %v1227, %v1295
        %1297 = vmatmul.f32.gmra.mxu0 %v1258
        %v1298 = vpop.f32.mrf.mxu0
        %v1299 = vadd.f32 %v1232, %v1298
        %1300 = vmatmul.f32.gmra.mxu0 %v1261
        %v1301 = vpop.f32.mrf.mxu0
        %v1302 = vadd.f32 %v1237, %v1301
        %1303 = vdwg.mxu0
        %v1304 = vtanh.pop %v1281
        %v1305 = vtanh.pop %v1284
        %v1306 = vtanh.pop %v1287
        %v1307 = vtanh.pop %v1290
        %v1308 = vxor.u32 %v1293, 2147483648
        %v1309 = vxor.u32 %v1296, 2147483648
        %v1310 = vxor.u32 %v1299, 2147483648
        %v1311 = vxor.u32 %v1302, 2147483648
        %v1312 = vmul.f32 %v1308, 1.442695
        %v1313 = vpow.pop %v1312
        %v1314 = vmul.f32 %v1309, 1.442695
        %v1315 = vpow.pop %v1314
        %v1316 = vmul.f32 %v1310, 1.442695
        %v1317 = vpow.pop %v1316
        %v1318 = vmul.f32 %v1311, 1.442695
        %v1319 = vpow.pop %v1318
        %v1320 = vadd.f32 %v1313, 1.0
        %v1321 = vadd.f32 %v1315, 1.0
        %v1322 = vadd.f32 %v1317, 1.0
        %v1323 = vadd.f32 %v1319, 1.0
        %v1324 = vrcp.pop %v1320
        %v1325 = vmul.f32 %v1320, %v1324
        %v1326 = vsub.f32 1.0, %v1325
        %v1327 = vmul.f32 %v1324, %v1326
        %v1328 = vadd.f32 %v1324, %v1327
        %vm1329 = vweird.f32 %v1320
        %vm1330 = vweird.f32 %v1324
        %vm1331 = vmor %vm1329, %vm1330
        %v1332 = vsel %vm1331, %v1324, %v1328
        %v1333 = vand.u32 2147483647, %v1320
        %vm1334 = vcmp.eq.f32.partialorder %v1333, 8.507059e+37
        %v1335 = vand.u32 %v1320, 2147483648
        %v1336 = vor.u32 1.1754944e-38, %v1335
        %v1337 = vsel %vm1334, %v1336, %v1332
        %v1338 = vmul.f32 1.0, %v1337
        %v1339 = vrcp.pop %v1321
        %v1340 = vmul.f32 %v1321, %v1339
        %v1341 = vsub.f32 1.0, %v1340
        %v1342 = vmul.f32 %v1339, %v1341
        %v1343 = vadd.f32 %v1339, %v1342
        %vm1344 = vweird.f32 %v1321
        %vm1345 = vweird.f32 %v1339
        %vm1346 = vmor %vm1344, %vm1345
        %v1347 = vsel %vm1346, %v1339, %v1343
        %v1348 = vand.u32 2147483647, %v1321
        %vm1349 = vcmp.eq.f32.partialorder %v1348, 8.507059e+37
        %v1350 = vand.u32 %v1321, 2147483648
        %v1351 = vor.u32 1.1754944e-38, %v1350
        %v1352 = vsel %vm1349, %v1351, %v1347
        %v1353 = vmul.f32 1.0, %v1352
        %v1354 = vrcp.pop %v1322
        %v1355 = vmul.f32 %v1322, %v1354
        %v1356 = vsub.f32 1.0, %v1355
        %v1357 = vmul.f32 %v1354, %v1356
        %v1358 = vadd.f32 %v1354, %v1357
        %vm1359 = vweird.f32 %v1322
        %vm1360 = vweird.f32 %v1354
        %vm1361 = vmor %vm1359, %vm1360
        %v1362 = vsel %vm1361, %v1354, %v1358
        %v1363 = vand.u32 2147483647, %v1322
        %vm1364 = vcmp.eq.f32.partialorder %v1363, 8.507059e+37
        %v1365 = vand.u32 %v1322, 2147483648
        %v1366 = vor.u32 1.1754944e-38, %v1365
        %v1367 = vsel %vm1364, %v1366, %v1362
        %v1368 = vmul.f32 1.0, %v1367
        %v1369 = vrcp.pop %v1323
        %v1370 = vmul.f32 %v1323, %v1369
        %v1371 = vsub.f32 1.0, %v1370
        %v1372 = vmul.f32 %v1369, %v1371
        %v1373 = vadd.f32 %v1369, %v1372
        %vm1374 = vweird.f32 %v1323
        %vm1375 = vweird.f32 %v1369
        %vm1376 = vmor %vm1374, %vm1375
        %v1377 = vsel %vm1376, %v1369, %v1373
        %v1378 = vand.u32 2147483647, %v1323
        %vm1379 = vcmp.eq.f32.partialorder %v1378, 8.507059e+37
        %v1380 = vand.u32 %v1323, 2147483648
        %v1381 = vor.u32 1.1754944e-38, %v1380
        %v1382 = vsel %vm1379, %v1381, %v1377
        %v1383 = vmul.f32 1.0, %v1382
        %v1384 = vmul.f32 %v1304, %v1338
        %v1385 = vmul.f32 %v1305, %v1353
        %v1386 = vmul.f32 %v1306, %v1368
        %v1387 = vmul.f32 %v1307, %v1383
        %s1388 = scalar_lea.vmem %s6, 64
        %v1389 = vld [vmem:[%s1388] sm:$0xff]
        %v1390 = vld [vmem:[%s1388 + $0x8] sm:$0xff]
        %v1391 = vld [vmem:[%s1388 + $0x10] sm:$0xff]
        %v1392 = vld [vmem:[%s1388 + $0x18] sm:$0xff]
        %v1393 = vld [vmem:[%s1388 + $0x20] sm:$0xff]
        %v1394 = vld [vmem:[%s1388 + $0x28] sm:$0xff]
        %v1395 = vld [vmem:[%s1388 + $0x30] sm:$0xff]
        %v1396 = vld [vmem:[%s1388 + $0x38] sm:$0xff]
        %s1397 = scalar_lea.vmem %s7, 64
        %v1398 = vld [vmem:[%s1397] sm:$0xff]
        %v1399 = vld [vmem:[%s1397 + $0x8] sm:$0xff]
        %v1400 = vld [vmem:[%s1397 + $0x10] sm:$0xff]
        %v1401 = vld [vmem:[%s1397 + $0x18] sm:$0xff]
        %v1402 = vld [vmem:[%s1397 + $0x20] sm:$0xff]
        %v1403 = vld [vmem:[%s1397 + $0x28] sm:$0xff]
        %v1404 = vld [vmem:[%s1397 + $0x30] sm:$0xff]
        %v1405 = vld [vmem:[%s1397 + $0x38] sm:$0xff]
        %1407 = vset.pattern.permute.xlu0 0
        %1408 = vperm.xlu0 %1407, %v1398
        %v1409 = vpop.permute.xlu0 %1408
        %1412 = vset.pattern.permute.xlu0 0
        %1413 = vperm.xlu0 %1412, %v1399
        %v1414 = vpop.permute.xlu0 %1413
        %1417 = vset.pattern.permute.xlu0 0
        %1418 = vperm.xlu0 %1417, %v1400
        %v1419 = vpop.permute.xlu0 %1418
        %1422 = vset.pattern.permute.xlu0 0
        %1423 = vperm.xlu0 %1422, %v1401
        %v1424 = vpop.permute.xlu0 %1423
        %1427 = vset.pattern.permute.xlu0 0
        %1428 = vperm.xlu0 %1427, %v1402
        %v1429 = vpop.permute.xlu0 %1428
        %1432 = vset.pattern.permute.xlu0 0
        %1433 = vperm.xlu0 %1432, %v1403
        %v1434 = vpop.permute.xlu0 %1433
        %1437 = vset.pattern.permute.xlu0 0
        %1438 = vperm.xlu0 %1437, %v1404
        %v1439 = vpop.permute.xlu0 %1438
        %1442 = vset.pattern.permute.xlu0 0
        %1443 = vperm.xlu0 %1442, %v1405
        %v1444 = vpop.permute.xlu0 %1443
        %v1447 = vsel %vm933, %v1389, 0
        %v1450 = vsel %vm933, %v1390, 0
        %v1453 = vsel %vm933, %v1391, 0
        %v1456 = vsel %vm933, %v1392, 0
        %v1459 = vsel %vm933, %v1393, 0
        %v1462 = vsel %vm933, %v1394, 0
        %v1465 = vsel %vm933, %v1395, 0
        %v1468 = vsel %vm933, %v1396, 0
        %1470 = vmatpush.msra.mxu0 0.0
        %1471 = vmatpush.msra.mxu0 0.0
        %1472 = vmatpush.msra.mxu0 0.0
        %1473 = vmatpush.msra.mxu0 0.0
        %1474 = vmatpush.msra.mxu0 0.0
        %1475 = vmatpush.msra.mxu0 0.0
        %1476 = vmatpush.msra.mxu0 0.0
        %1477 = vmatpush.msra.mxu0 0.0
        %1478 = vmatpush.msra.mxu0 0.0
        %1479 = vmatpush.msra.mxu0 0.0
        %1480 = vmatpush.msra.mxu0 0.0
        %1481 = vmatpush.msra.mxu0 0.0
        %1482 = vmatpush.msra.mxu0 %v1387
        %1483 = vmatpush.msra.mxu0 %v1386
        %1484 = vmatpush.msra.mxu0 %v1385
        %1485 = vmatpush.msra.mxu0 %v1384
        %1486 = vmatmul.f32.gmra.mxu0 %v1447
        %v1487 = vpop.f32.mrf.mxu0
        %v1488 = vadd.f32 %v1409, %v1487
        %1489 = vmatmul.f32.gmra.mxu0 %v1450
        %v1490 = vpop.f32.mrf.mxu0
        %v1491 = vadd.f32 %v1414, %v1490
        %1492 = vmatmul.f32.gmra.mxu0 %v1453
        %v1493 = vpop.f32.mrf.mxu0
        %v1494 = vadd.f32 %v1419, %v1493
        %1495 = vmatmul.f32.gmra.mxu0 %v1456
        %v1496 = vpop.f32.mrf.mxu0
        %v1497 = vadd.f32 %v1424, %v1496
        %1498 = vmatmul.f32.gmra.mxu0 %v1459
        %v1499 = vpop.f32.mrf.mxu0
        %v1500 = vadd.f32 %v1429, %v1499
        %1501 = vmatmul.f32.gmra.mxu0 %v1462
        %v1502 = vpop.f32.mrf.mxu0
        %v1503 = vadd.f32 %v1434, %v1502
        %1504 = vmatmul.f32.gmra.mxu0 %v1465
        %v1505 = vpop.f32.mrf.mxu0
        %v1506 = vadd.f32 %v1439, %v1505
        %1507 = vmatmul.f32.gmra.mxu0 %v1468
        %v1508 = vpop.f32.mrf.mxu0
        %v1509 = vadd.f32 %v1444, %v1508
        %1510 = vdwg.mxu0
        %v1511 = vadd.f32 %v1003, %v1488
        %v1512 = vadd.f32 %v1004, %v1491
        %v1513 = vadd.f32 %v1005, %v1494
        %v1514 = vadd.f32 %v1006, %v1497
        %v1515 = vmul.f32 %v1511, %v483
        %v1516 = vmul.f32 %v1512, %v483
        %v1517 = vmul.f32 %v1513, %v483
        %v1518 = vmul.f32 %v1514, %v483
        %v1519 = vadd.f32 %v1007, %v1500
        %v1520 = vadd.f32 %v1008, %v1503
        %v1521 = vadd.f32 %v1009, %v1506
        %v1522 = vadd.f32 %v1010, %v1509
        %1527 = vrot.lane.b32.xlu0 %v1515, 8
        %v1528 = vpop.permute.xlu0 %1527
        %1529 = vrot.lane.b32.xlu0 %v1516, 8
        %v1530 = vpop.permute.xlu0 %1529
        %1531 = vrot.lane.b32.xlu0 %v1517, 8
        %v1532 = vpop.permute.xlu0 %1531
        %1533 = vrot.lane.b32.xlu0 %v1518, 8
        %v1534 = vpop.permute.xlu0 %1533
        %1539 = vst.msk [vmem:[#allocation2] sm:$0xff] %vm515, %v1528
        %1540 = vst.msk [vmem:[#allocation2 + $0x8] sm:$0xff] %vm489, %v1528
        %1541 = vst.msk [vmem:[#allocation2 + $0x10] sm:$0xff] %vm515, %v1530
        %1542 = vst.msk [vmem:[#allocation2 + $0x18] sm:$0xff] %vm489, %v1530
        %1543 = vst.msk [vmem:[#allocation2 + $0x20] sm:$0xff] %vm515, %v1532
        %1544 = vst.msk [vmem:[#allocation2 + $0x28] sm:$0xff] %vm489, %v1532
        %1545 = vst.msk [vmem:[#allocation2 + $0x30] sm:$0xff] %vm515, %v1534
        %1546 = vst.msk [vmem:[#allocation2 + $0x38] sm:$0xff] %vm489, %v1534
        %v1547 = vld [vmem:[#allocation2] sm:$0xff]
        %v1548 = vld [vmem:[#allocation2 + $0x8] sm:$0xff]
        %v1549 = vld [vmem:[#allocation2 + $0x10] sm:$0xff]
        %v1550 = vld [vmem:[#allocation2 + $0x18] sm:$0xff]
        %v1551 = vld [vmem:[#allocation2 + $0x20] sm:$0xff]
        %v1552 = vld [vmem:[#allocation2 + $0x28] sm:$0xff]
        %v1553 = vld [vmem:[#allocation2 + $0x30] sm:$0xff]
        %v1554 = vld [vmem:[#allocation2 + $0x38] sm:$0xff]
        %1563 = vrot.lane.b32.xlu0 %v1547, 124
        %v1564 = vpop.permute.xlu0 %1563
        %1565 = vrot.lane.b32.xlu0 %v1548, 124
        %v1566 = vpop.permute.xlu0 %1565
        %1567 = vrot.lane.b32.xlu0 %v1549, 124
        %v1568 = vpop.permute.xlu0 %1567
        %1569 = vrot.lane.b32.xlu0 %v1550, 124
        %v1570 = vpop.permute.xlu0 %1569
        %1571 = vrot.lane.b32.xlu0 %v1551, 124
        %v1572 = vpop.permute.xlu0 %1571
        %1573 = vrot.lane.b32.xlu0 %v1552, 124
        %v1574 = vpop.permute.xlu0 %1573
        %1575 = vrot.lane.b32.xlu0 %v1553, 124
        %v1576 = vpop.permute.xlu0 %1575
        %1577 = vrot.lane.b32.xlu0 %v1554, 124
        %v1578 = vpop.permute.xlu0 %1577
        %vm1579 = vcmask 1014784
        %v1580 = vsel %vm1579, %v1564, %v1566
        %v1581 = vsel %vm1579, %v1568, %v1570
        %v1582 = vsel %vm1579, %v1572, %v1574
        %v1583 = vsel %vm1579, %v1576, %v1578
        %1588 = vst [vmem:[#allocation3] sm:$0xff] %v1580
        %1589 = vst [vmem:[#allocation3 + $0x8] sm:$0xff] %v1581
        %1590 = vst [vmem:[#allocation3 + $0x10] sm:$0xff] %v1582
        %1591 = vst [vmem:[#allocation3 + $0x18] sm:$0xff] %v1583
        %v1592 = vld [vmem:[#allocation2] sm:$0xff]
        %v1593 = vld [vmem:[#allocation2 + $0x8] sm:$0xff]
        %v1594 = vld [vmem:[#allocation2 + $0x10] sm:$0xff]
        %v1595 = vld [vmem:[#allocation2 + $0x18] sm:$0xff]
        %v1596 = vld [vmem:[#allocation2 + $0x20] sm:$0xff]
        %v1597 = vld [vmem:[#allocation2 + $0x28] sm:$0xff]
        %v1598 = vld [vmem:[#allocation2 + $0x30] sm:$0xff]
        %v1599 = vld [vmem:[#allocation2 + $0x38] sm:$0xff]
        %1608 = vrot.lane.b32.xlu0 %v1592, 120
        %v1609 = vpop.permute.xlu0 %1608
        %1610 = vrot.lane.b32.xlu0 %v1593, 120
        %v1611 = vpop.permute.xlu0 %1610
        %1612 = vrot.lane.b32.xlu0 %v1594, 120
        %v1613 = vpop.permute.xlu0 %1612
        %1614 = vrot.lane.b32.xlu0 %v1595, 120
        %v1615 = vpop.permute.xlu0 %1614
        %1616 = vrot.lane.b32.xlu0 %v1596, 120
        %v1617 = vpop.permute.xlu0 %1616
        %1618 = vrot.lane.b32.xlu0 %v1597, 120
        %v1619 = vpop.permute.xlu0 %1618
        %1620 = vrot.lane.b32.xlu0 %v1598, 120
        %v1621 = vpop.permute.xlu0 %1620
        %1622 = vrot.lane.b32.xlu0 %v1599, 120
        %v1623 = vpop.permute.xlu0 %1622
        %v1624 = vsel %vm601, %v1609, %v1611
        %v1625 = vsel %vm601, %v1613, %v1615
        %v1626 = vsel %vm601, %v1617, %v1619
        %v1627 = vsel %vm601, %v1621, %v1623
        %1632 = vst [vmem:[#allocation3 + $0x20] sm:$0xff] %v1624
        %1633 = vst [vmem:[#allocation3 + $0x28] sm:$0xff] %v1625
        %1634 = vst [vmem:[#allocation3 + $0x30] sm:$0xff] %v1626
        %1635 = vst [vmem:[#allocation3 + $0x38] sm:$0xff] %v1627
        %v1636 = vld [vmem:[#allocation2] sm:$0xff]
        %v1637 = vld [vmem:[#allocation2 + $0x8] sm:$0xff]
        %v1638 = vld [vmem:[#allocation2 + $0x10] sm:$0xff]
        %v1639 = vld [vmem:[#allocation2 + $0x18] sm:$0xff]
        %v1640 = vld [vmem:[#allocation2 + $0x20] sm:$0xff]
        %v1641 = vld [vmem:[#allocation2 + $0x28] sm:$0xff]
        %v1642 = vld [vmem:[#allocation2 + $0x30] sm:$0xff]
        %v1643 = vld [vmem:[#allocation2 + $0x38] sm:$0xff]
        %1652 = vrot.lane.b32.xlu0 %v1636, 116
        %v1653 = vpop.permute.xlu0 %1652
        %1654 = vrot.lane.b32.xlu0 %v1637, 116
        %v1655 = vpop.permute.xlu0 %1654
        %1656 = vrot.lane.b32.xlu0 %v1638, 116
        %v1657 = vpop.permute.xlu0 %1656
        %1658 = vrot.lane.b32.xlu0 %v1639, 116
        %v1659 = vpop.permute.xlu0 %1658
        %1660 = vrot.lane.b32.xlu0 %v1640, 116
        %v1661 = vpop.permute.xlu0 %1660
        %1662 = vrot.lane.b32.xlu0 %v1641, 116
        %v1663 = vpop.permute.xlu0 %1662
        %1664 = vrot.lane.b32.xlu0 %v1642, 116
        %v1665 = vpop.permute.xlu0 %1664
        %1666 = vrot.lane.b32.xlu0 %v1643, 116
        %v1667 = vpop.permute.xlu0 %1666
        %vm1668 = vcmask 949248
        %v1669 = vsel %vm1668, %v1653, %v1655
        %v1670 = vsel %vm1668, %v1657, %v1659
        %v1671 = vsel %vm1668, %v1661, %v1663
        %v1672 = vsel %vm1668, %v1665, %v1667
        %1677 = vst [vmem:[#allocation3 + $0x40] sm:$0xff] %v1669
        %1678 = vst [vmem:[#allocation3 + $0x48] sm:$0xff] %v1670
        %1679 = vst [vmem:[#allocation3 + $0x50] sm:$0xff] %v1671
        %1680 = vst [vmem:[#allocation3 + $0x58] sm:$0xff] %v1672
        %s1681 = scalar_lea.vmem %s4, 128
        %v1682 = vld [vmem:[%s1681] sm:$0xff]
        %v1683 = vld [vmem:[%s1681 + $0x8] sm:$0xff]
        %v1684 = vld [vmem:[%s1681 + $0x10] sm:$0xff]
        %v1685 = vld [vmem:[%s1681 + $0x18] sm:$0xff]
        %v1686 = vld [vmem:[%s1681 + $0x20] sm:$0xff]
        %v1687 = vld [vmem:[%s1681 + $0x28] sm:$0xff]
        %v1688 = vld [vmem:[%s1681 + $0x30] sm:$0xff]
        %v1689 = vld [vmem:[%s1681 + $0x38] sm:$0xff]
        %v1690 = vld [vmem:[#allocation3] sm:$0xff]
        %v1691 = vld [vmem:[#allocation3 + $0x8] sm:$0xff]
        %v1692 = vld [vmem:[#allocation3 + $0x10] sm:$0xff]
        %v1693 = vld [vmem:[#allocation3 + $0x18] sm:$0xff]
        %v1694 = vld [vmem:[#allocation3 + $0x20] sm:$0xff]
        %v1695 = vld [vmem:[#allocation3 + $0x28] sm:$0xff]
        %v1696 = vld [vmem:[#allocation3 + $0x30] sm:$0xff]
        %v1697 = vld [vmem:[#allocation3 + $0x38] sm:$0xff]
        %v1698 = vld [vmem:[#allocation3 + $0x40] sm:$0xff]
        %v1699 = vld [vmem:[#allocation3 + $0x48] sm:$0xff]
        %v1700 = vld [vmem:[#allocation3 + $0x50] sm:$0xff]
        %v1701 = vld [vmem:[#allocation3 + $0x58] sm:$0xff]
        %s1702 = scalar_lea.vmem %s5, 128
        %v1703 = vld [vmem:[%s1702] sm:$0xff]
        %v1704 = vld [vmem:[%s1702 + $0x8] sm:$0xff]
        %v1705 = vld [vmem:[%s1702 + $0x10] sm:$0xff]
        %v1706 = vld [vmem:[%s1702 + $0x18] sm:$0xff]
        %v1707 = vld [vmem:[%s1702 + $0x20] sm:$0xff]
        %v1708 = vld [vmem:[%s1702 + $0x28] sm:$0xff]
        %v1709 = vld [vmem:[%s1702 + $0x30] sm:$0xff]
        %v1710 = vld [vmem:[%s1702 + $0x38] sm:$0xff]
        %1712 = vset.pattern.permute.xlu0 0
        %1713 = vperm.xlu0 %1712, %v1703
        %v1714 = vpop.permute.xlu0 %1713
        %1717 = vset.pattern.permute.xlu0 0
        %1718 = vperm.xlu0 %1717, %v1704
        %v1719 = vpop.permute.xlu0 %1718
        %1722 = vset.pattern.permute.xlu0 0
        %1723 = vperm.xlu0 %1722, %v1705
        %v1724 = vpop.permute.xlu0 %1723
        %1727 = vset.pattern.permute.xlu0 0
        %1728 = vperm.xlu0 %1727, %v1706
        %v1729 = vpop.permute.xlu0 %1728
        %1732 = vset.pattern.permute.xlu0 0
        %1733 = vperm.xlu0 %1732, %v1707
        %v1734 = vpop.permute.xlu0 %1733
        %1737 = vset.pattern.permute.xlu0 0
        %1738 = vperm.xlu0 %1737, %v1708
        %v1739 = vpop.permute.xlu0 %1738
        %1742 = vset.pattern.permute.xlu0 0
        %1743 = vperm.xlu0 %1742, %v1709
        %v1744 = vpop.permute.xlu0 %1743
        %1747 = vset.pattern.permute.xlu0 0
        %1748 = vperm.xlu0 %1747, %v1710
        %v1749 = vpop.permute.xlu0 %1748
        %v1752 = vsel %vm727, %v1682, 0
        %v1755 = vsel %vm727, %v1683, 0
        %v1758 = vsel %vm727, %v1684, 0
        %v1761 = vsel %vm727, %v1685, 0
        %v1764 = vsel %vm727, %v1686, 0
        %v1767 = vsel %vm727, %v1687, 0
        %v1770 = vsel %vm727, %v1688, 0
        %v1773 = vsel %vm727, %v1689, 0
        %1775 = vmatpush.msra.mxu0 0.0
        %1776 = vmatpush.msra.mxu0 0.0
        %1777 = vmatpush.msra.mxu0 0.0
        %1778 = vmatpush.msra.mxu0 0.0
        %1779 = vmatpush.msra.mxu0 %v1701
        %1780 = vmatpush.msra.mxu0 %v1700
        %1781 = vmatpush.msra.mxu0 %v1699
        %1782 = vmatpush.msra.mxu0 %v1698
        %1783 = vmatpush.msra.mxu0 %v1697
        %1784 = vmatpush.msra.mxu0 %v1696
        %1785 = vmatpush.msra.mxu0 %v1695
        %1786 = vmatpush.msra.mxu0 %v1694
        %1787 = vmatpush.msra.mxu0 %v1693
        %1788 = vmatpush.msra.mxu0 %v1692
        %1789 = vmatpush.msra.mxu0 %v1691
        %1790 = vmatpush.msra.mxu0 %v1690
        %1791 = vmatmul.f32.gmra.mxu0 %v1752
        %v1792 = vpop.f32.mrf.mxu0
        %v1793 = vadd.f32 %v1714, %v1792
        %1794 = vmatmul.f32.gmra.mxu0 %v1755
        %v1795 = vpop.f32.mrf.mxu0
        %v1796 = vadd.f32 %v1719, %v1795
        %1797 = vmatmul.f32.gmra.mxu0 %v1758
        %v1798 = vpop.f32.mrf.mxu0
        %v1799 = vadd.f32 %v1724, %v1798
        %1800 = vmatmul.f32.gmra.mxu0 %v1761
        %v1801 = vpop.f32.mrf.mxu0
        %v1802 = vadd.f32 %v1729, %v1801
        %1803 = vmatmul.f32.gmra.mxu0 %v1764
        %v1804 = vpop.f32.mrf.mxu0
        %v1805 = vadd.f32 %v1734, %v1804
        %1806 = vmatmul.f32.gmra.mxu0 %v1767
        %v1807 = vpop.f32.mrf.mxu0
        %v1808 = vadd.f32 %v1739, %v1807
        %1809 = vmatmul.f32.gmra.mxu0 %v1770
        %v1810 = vpop.f32.mrf.mxu0
        %v1811 = vadd.f32 %v1744, %v1810
        %1812 = vmatmul.f32.gmra.mxu0 %v1773
        %v1813 = vpop.f32.mrf.mxu0
        %v1814 = vadd.f32 %v1749, %v1813
        %1815 = vdwg.mxu0
        %v1816 = vtanh.pop %v1793
        %v1817 = vtanh.pop %v1796
        %v1818 = vtanh.pop %v1799
        %v1819 = vtanh.pop %v1802
        %v1820 = vxor.u32 %v1805, 2147483648
        %v1821 = vxor.u32 %v1808, 2147483648
        %v1822 = vxor.u32 %v1811, 2147483648
        %v1823 = vxor.u32 %v1814, 2147483648
        %v1824 = vmul.f32 %v1820, 1.442695
        %v1825 = vpow.pop %v1824
        %v1826 = vmul.f32 %v1821, 1.442695
        %v1827 = vpow.pop %v1826
        %v1828 = vmul.f32 %v1822, 1.442695
        %v1829 = vpow.pop %v1828
        %v1830 = vmul.f32 %v1823, 1.442695
        %v1831 = vpow.pop %v1830
        %v1832 = vadd.f32 %v1825, 1.0
        %v1833 = vadd.f32 %v1827, 1.0
        %v1834 = vadd.f32 %v1829, 1.0
        %v1835 = vadd.f32 %v1831, 1.0
        %v1836 = vrcp.pop %v1832
        %v1837 = vmul.f32 %v1832, %v1836
        %v1838 = vsub.f32 1.0, %v1837
        %v1839 = vmul.f32 %v1836, %v1838
        %v1840 = vadd.f32 %v1836, %v1839
        %vm1841 = vweird.f32 %v1832
        %vm1842 = vweird.f32 %v1836
        %vm1843 = vmor %vm1841, %vm1842
        %v1844 = vsel %vm1843, %v1836, %v1840
        %v1845 = vand.u32 2147483647, %v1832
        %vm1846 = vcmp.eq.f32.partialorder %v1845, 8.507059e+37
        %v1847 = vand.u32 %v1832, 2147483648
        %v1848 = vor.u32 1.1754944e-38, %v1847
        %v1849 = vsel %vm1846, %v1848, %v1844
        %v1850 = vmul.f32 1.0, %v1849
        %v1851 = vrcp.pop %v1833
        %v1852 = vmul.f32 %v1833, %v1851
        %v1853 = vsub.f32 1.0, %v1852
        %v1854 = vmul.f32 %v1851, %v1853
        %v1855 = vadd.f32 %v1851, %v1854
        %vm1856 = vweird.f32 %v1833
        %vm1857 = vweird.f32 %v1851
        %vm1858 = vmor %vm1856, %vm1857
        %v1859 = vsel %vm1858, %v1851, %v1855
        %v1860 = vand.u32 2147483647, %v1833
        %vm1861 = vcmp.eq.f32.partialorder %v1860, 8.507059e+37
        %v1862 = vand.u32 %v1833, 2147483648
        %v1863 = vor.u32 1.1754944e-38, %v1862
        %v1864 = vsel %vm1861, %v1863, %v1859
        %v1865 = vmul.f32 1.0, %v1864
        %v1866 = vrcp.pop %v1834
        %v1867 = vmul.f32 %v1834, %v1866
        %v1868 = vsub.f32 1.0, %v1867
        %v1869 = vmul.f32 %v1866, %v1868
        %v1870 = vadd.f32 %v1866, %v1869
        %vm1871 = vweird.f32 %v1834
        %vm1872 = vweird.f32 %v1866
        %vm1873 = vmor %vm1871, %vm1872
        %v1874 = vsel %vm1873, %v1866, %v1870
        %v1875 = vand.u32 2147483647, %v1834
        %vm1876 = vcmp.eq.f32.partialorder %v1875, 8.507059e+37
        %v1877 = vand.u32 %v1834, 2147483648
        %v1878 = vor.u32 1.1754944e-38, %v1877
        %v1879 = vsel %vm1876, %v1878, %v1874
        %v1880 = vmul.f32 1.0, %v1879
        %v1881 = vrcp.pop %v1835
        %v1882 = vmul.f32 %v1835, %v1881
        %v1883 = vsub.f32 1.0, %v1882
        %v1884 = vmul.f32 %v1881, %v1883
        %v1885 = vadd.f32 %v1881, %v1884
        %vm1886 = vweird.f32 %v1835
        %vm1887 = vweird.f32 %v1881
        %vm1888 = vmor %vm1886, %vm1887
        %v1889 = vsel %vm1888, %v1881, %v1885
        %v1890 = vand.u32 2147483647, %v1835
        %vm1891 = vcmp.eq.f32.partialorder %v1890, 8.507059e+37
        %v1892 = vand.u32 %v1835, 2147483648
        %v1893 = vor.u32 1.1754944e-38, %v1892
        %v1894 = vsel %vm1891, %v1893, %v1889
        %v1895 = vmul.f32 1.0, %v1894
        %v1896 = vmul.f32 %v1816, %v1850
        %v1897 = vmul.f32 %v1817, %v1865
        %v1898 = vmul.f32 %v1818, %v1880
        %v1899 = vmul.f32 %v1819, %v1895
        %s1900 = scalar_lea.vmem %s6, 128
        %v1901 = vld [vmem:[%s1900] sm:$0xff]
        %v1902 = vld [vmem:[%s1900 + $0x8] sm:$0xff]
        %v1903 = vld [vmem:[%s1900 + $0x10] sm:$0xff]
        %v1904 = vld [vmem:[%s1900 + $0x18] sm:$0xff]
        %v1905 = vld [vmem:[%s1900 + $0x20] sm:$0xff]
        %v1906 = vld [vmem:[%s1900 + $0x28] sm:$0xff]
        %v1907 = vld [vmem:[%s1900 + $0x30] sm:$0xff]
        %v1908 = vld [vmem:[%s1900 + $0x38] sm:$0xff]
        %s1909 = scalar_lea.vmem %s7, 128
        %v1910 = vld [vmem:[%s1909] sm:$0xff]
        %v1911 = vld [vmem:[%s1909 + $0x8] sm:$0xff]
        %v1912 = vld [vmem:[%s1909 + $0x10] sm:$0xff]
        %v1913 = vld [vmem:[%s1909 + $0x18] sm:$0xff]
        %v1914 = vld [vmem:[%s1909 + $0x20] sm:$0xff]
        %v1915 = vld [vmem:[%s1909 + $0x28] sm:$0xff]
        %v1916 = vld [vmem:[%s1909 + $0x30] sm:$0xff]
        %v1917 = vld [vmem:[%s1909 + $0x38] sm:$0xff]
        %1919 = vset.pattern.permute.xlu0 0
        %1920 = vperm.xlu0 %1919, %v1910
        %v1921 = vpop.permute.xlu0 %1920
        %1924 = vset.pattern.permute.xlu0 0
        %1925 = vperm.xlu0 %1924, %v1911
        %v1926 = vpop.permute.xlu0 %1925
        %1929 = vset.pattern.permute.xlu0 0
        %1930 = vperm.xlu0 %1929, %v1912
        %v1931 = vpop.permute.xlu0 %1930
        %1934 = vset.pattern.permute.xlu0 0
        %1935 = vperm.xlu0 %1934, %v1913
        %v1936 = vpop.permute.xlu0 %1935
        %1939 = vset.pattern.permute.xlu0 0
        %1940 = vperm.xlu0 %1939, %v1914
        %v1941 = vpop.permute.xlu0 %1940
        %1944 = vset.pattern.permute.xlu0 0
        %1945 = vperm.xlu0 %1944, %v1915
        %v1946 = vpop.permute.xlu0 %1945
        %1949 = vset.pattern.permute.xlu0 0
        %1950 = vperm.xlu0 %1949, %v1916
        %v1951 = vpop.permute.xlu0 %1950
        %1954 = vset.pattern.permute.xlu0 0
        %1955 = vperm.xlu0 %1954, %v1917
        %v1956 = vpop.permute.xlu0 %1955
        %v1959 = vsel %vm933, %v1901, 0
        %v1962 = vsel %vm933, %v1902, 0
        %v1965 = vsel %vm933, %v1903, 0
        %v1968 = vsel %vm933, %v1904, 0
        %v1971 = vsel %vm933, %v1905, 0
        %v1974 = vsel %vm933, %v1906, 0
        %v1977 = vsel %vm933, %v1907, 0
        %v1980 = vsel %vm933, %v1908, 0
        %1982 = vmatpush.msra.mxu0 0.0
        %1983 = vmatpush.msra.mxu0 0.0
        %1984 = vmatpush.msra.mxu0 0.0
        %1985 = vmatpush.msra.mxu0 0.0
        %1986 = vmatpush.msra.mxu0 0.0
        %1987 = vmatpush.msra.mxu0 0.0
        %1988 = vmatpush.msra.mxu0 0.0
        %1989 = vmatpush.msra.mxu0 0.0
        %1990 = vmatpush.msra.mxu0 0.0
        %1991 = vmatpush.msra.mxu0 0.0
        %1992 = vmatpush.msra.mxu0 0.0
        %1993 = vmatpush.msra.mxu0 0.0
        %1994 = vmatpush.msra.mxu0 %v1899
        %1995 = vmatpush.msra.mxu0 %v1898
        %1996 = vmatpush.msra.mxu0 %v1897
        %1997 = vmatpush.msra.mxu0 %v1896
        %1998 = vmatmul.f32.gmra.mxu0 %v1959
        %v1999 = vpop.f32.mrf.mxu0
        %v2000 = vadd.f32 %v1921, %v1999
        %2001 = vmatmul.f32.gmra.mxu0 %v1962
        %v2002 = vpop.f32.mrf.mxu0
        %v2003 = vadd.f32 %v1926, %v2002
        %2004 = vmatmul.f32.gmra.mxu0 %v1965
        %v2005 = vpop.f32.mrf.mxu0
        %v2006 = vadd.f32 %v1931, %v2005
        %2007 = vmatmul.f32.gmra.mxu0 %v1968
        %v2008 = vpop.f32.mrf.mxu0
        %v2009 = vadd.f32 %v1936, %v2008
        %2010 = vmatmul.f32.gmra.mxu0 %v1971
        %v2011 = vpop.f32.mrf.mxu0
        %v2012 = vadd.f32 %v1941, %v2011
        %2013 = vmatmul.f32.gmra.mxu0 %v1974
        %v2014 = vpop.f32.mrf.mxu0
        %v2015 = vadd.f32 %v1946, %v2014
        %2016 = vmatmul.f32.gmra.mxu0 %v1977
        %v2017 = vpop.f32.mrf.mxu0
        %v2018 = vadd.f32 %v1951, %v2017
        %2019 = vmatmul.f32.gmra.mxu0 %v1980
        %v2020 = vpop.f32.mrf.mxu0
        %v2021 = vadd.f32 %v1956, %v2020
        %2022 = vdwg.mxu0
        %v2023 = vadd.f32 %v1515, %v2000
        %v2024 = vadd.f32 %v1516, %v2003
        %v2025 = vadd.f32 %v1517, %v2006
        %v2026 = vadd.f32 %v1518, %v2009
        %v2027 = vmul.f32 %v2023, %v483
        %v2028 = vmul.f32 %v2024, %v483
        %v2029 = vmul.f32 %v2025, %v483
        %v2030 = vmul.f32 %v2026, %v483
        %v2031 = vadd.f32 %v1519, %v2012
        %v2032 = vadd.f32 %v1520, %v2015
        %v2033 = vadd.f32 %v1521, %v2018
        %v2034 = vadd.f32 %v1522, %v2021
        %2039 = vrot.lane.b32.xlu0 %v2027, 8
        %v2040 = vpop.permute.xlu0 %2039
        %2041 = vrot.lane.b32.xlu0 %v2028, 8
        %v2042 = vpop.permute.xlu0 %2041
        %2043 = vrot.lane.b32.xlu0 %v2029, 8
        %v2044 = vpop.permute.xlu0 %2043
        %2045 = vrot.lane.b32.xlu0 %v2030, 8
        %v2046 = vpop.permute.xlu0 %2045
        %2051 = vst.msk [vmem:[#allocation2] sm:$0xff] %vm515, %v2040
        %2052 = vst.msk [vmem:[#allocation2 + $0x8] sm:$0xff] %vm489, %v2040
        %2053 = vst.msk [vmem:[#allocation2 + $0x10] sm:$0xff] %vm515, %v2042
        %2054 = vst.msk [vmem:[#allocation2 + $0x18] sm:$0xff] %vm489, %v2042
        %2055 = vst.msk [vmem:[#allocation2 + $0x20] sm:$0xff] %vm515, %v2044
        %2056 = vst.msk [vmem:[#allocation2 + $0x28] sm:$0xff] %vm489, %v2044
        %2057 = vst.msk [vmem:[#allocation2 + $0x30] sm:$0xff] %vm515, %v2046
        %2058 = vst.msk [vmem:[#allocation2 + $0x38] sm:$0xff] %vm489, %v2046
        %v2059 = vld [vmem:[#allocation2] sm:$0xff]
        %v2060 = vld [vmem:[#allocation2 + $0x10] sm:$0xff]
        %v2061 = vld [vmem:[#allocation2 + $0x20] sm:$0xff]
        %v2062 = vld [vmem:[#allocation2 + $0x30] sm:$0xff]
        %2063 = vst [vmem:[#allocation3] sm:$0xff] %v2059
        %2064 = vst [vmem:[#allocation3 + $0x8] sm:$0xff] %v2060
        %2065 = vst [vmem:[#allocation3 + $0x10] sm:$0xff] %v2061
        %2066 = vst [vmem:[#allocation3 + $0x18] sm:$0xff] %v2062
        %v2067 = vld [vmem:[#allocation2] sm:$0xff]
        %v2068 = vld [vmem:[#allocation2 + $0x8] sm:$0xff]
        %v2069 = vld [vmem:[#allocation2 + $0x10] sm:$0xff]
        %v2070 = vld [vmem:[#allocation2 + $0x18] sm:$0xff]
        %v2071 = vld [vmem:[#allocation2 + $0x20] sm:$0xff]
        %v2072 = vld [vmem:[#allocation2 + $0x28] sm:$0xff]
        %v2073 = vld [vmem:[#allocation2 + $0x30] sm:$0xff]
        %v2074 = vld [vmem:[#allocation2 + $0x38] sm:$0xff]
        %2083 = vrot.lane.b32.xlu0 %v2067, 120
        %v2084 = vpop.permute.xlu0 %2083
        %2085 = vrot.lane.b32.xlu0 %v2068, 120
        %v2086 = vpop.permute.xlu0 %2085
        %2087 = vrot.lane.b32.xlu0 %v2069, 120
        %v2088 = vpop.permute.xlu0 %2087
        %2089 = vrot.lane.b32.xlu0 %v2070, 120
        %v2090 = vpop.permute.xlu0 %2089
        %2091 = vrot.lane.b32.xlu0 %v2071, 120
        %v2092 = vpop.permute.xlu0 %2091
        %2093 = vrot.lane.b32.xlu0 %v2072, 120
        %v2094 = vpop.permute.xlu0 %2093
        %2095 = vrot.lane.b32.xlu0 %v2073, 120
        %v2096 = vpop.permute.xlu0 %2095
        %2097 = vrot.lane.b32.xlu0 %v2074, 120
        %v2098 = vpop.permute.xlu0 %2097
        %v2099 = vsel %vm601, %v2084, %v2086
        %v2100 = vsel %vm601, %v2088, %v2090
        %v2101 = vsel %vm601, %v2092, %v2094
        %v2102 = vsel %vm601, %v2096, %v2098
        %2107 = vst [vmem:[#allocation3 + $0x20] sm:$0xff] %v2099
        %2108 = vst [vmem:[#allocation3 + $0x28] sm:$0xff] %v2100
        %2109 = vst [vmem:[#allocation3 + $0x30] sm:$0xff] %v2101
        %2110 = vst [vmem:[#allocation3 + $0x38] sm:$0xff] %v2102
        %v2111 = vld [vmem:[#allocation2] sm:$0xff]
        %v2112 = vld [vmem:[#allocation2 + $0x8] sm:$0xff]
        %v2113 = vld [vmem:[#allocation2 + $0x10] sm:$0xff]
        %v2114 = vld [vmem:[#allocation2 + $0x18] sm:$0xff]
        %v2115 = vld [vmem:[#allocation2 + $0x20] sm:$0xff]
        %v2116 = vld [vmem:[#allocation2 + $0x28] sm:$0xff]
        %v2117 = vld [vmem:[#allocation2 + $0x30] sm:$0xff]
        %v2118 = vld [vmem:[#allocation2 + $0x38] sm:$0xff]
        %2127 = vrot.lane.b32.xlu0 %v2111, 112
        %v2128 = vpop.permute.xlu0 %2127
        %2129 = vrot.lane.b32.xlu0 %v2112, 112
        %v2130 = vpop.permute.xlu0 %2129
        %2131 = vrot.lane.b32.xlu0 %v2113, 112
        %v2132 = vpop.permute.xlu0 %2131
        %2133 = vrot.lane.b32.xlu0 %v2114, 112
        %v2134 = vpop.permute.xlu0 %2133
        %2135 = vrot.lane.b32.xlu0 %v2115, 112
        %v2136 = vpop.permute.xlu0 %2135
        %2137 = vrot.lane.b32.xlu0 %v2116, 112
        %v2138 = vpop.permute.xlu0 %2137
        %2139 = vrot.lane.b32.xlu0 %v2117, 112
        %v2140 = vpop.permute.xlu0 %2139
        %2141 = vrot.lane.b32.xlu0 %v2118, 112
        %v2142 = vpop.permute.xlu0 %2141
        %vm2143 = vcmask 916480
        %v2144 = vsel %vm2143, %v2128, %v2130
        %v2145 = vsel %vm2143, %v2132, %v2134
        %v2146 = vsel %vm2143, %v2136, %v2138
        %v2147 = vsel %vm2143, %v2140, %v2142
        %2152 = vst [vmem:[#allocation3 + $0x40] sm:$0xff] %v2144
        %2153 = vst [vmem:[#allocation3 + $0x48] sm:$0xff] %v2145
        %2154 = vst [vmem:[#allocation3 + $0x50] sm:$0xff] %v2146
        %2155 = vst [vmem:[#allocation3 + $0x58] sm:$0xff] %v2147
        %s2156 = scalar_lea.vmem %s4, 192
        %v2157 = vld [vmem:[%s2156] sm:$0xff]
        %v2158 = vld [vmem:[%s2156 + $0x8] sm:$0xff]
        %v2159 = vld [vmem:[%s2156 + $0x10] sm:$0xff]
        %v2160 = vld [vmem:[%s2156 + $0x18] sm:$0xff]
        %v2161 = vld [vmem:[%s2156 + $0x20] sm:$0xff]
        %v2162 = vld [vmem:[%s2156 + $0x28] sm:$0xff]
        %v2163 = vld [vmem:[%s2156 + $0x30] sm:$0xff]
        %v2164 = vld [vmem:[%s2156 + $0x38] sm:$0xff]
        %v2165 = vld [vmem:[#allocation3] sm:$0xff]
        %v2166 = vld [vmem:[#allocation3 + $0x8] sm:$0xff]
        %v2167 = vld [vmem:[#allocation3 + $0x10] sm:$0xff]
        %v2168 = vld [vmem:[#allocation3 + $0x18] sm:$0xff]
        %v2169 = vld [vmem:[#allocation3 + $0x20] sm:$0xff]
        %v2170 = vld [vmem:[#allocation3 + $0x28] sm:$0xff]
        %v2171 = vld [vmem:[#allocation3 + $0x30] sm:$0xff]
        %v2172 = vld [vmem:[#allocation3 + $0x38] sm:$0xff]
        %v2173 = vld [vmem:[#allocation3 + $0x40] sm:$0xff]
        %v2174 = vld [vmem:[#allocation3 + $0x48] sm:$0xff]
        %v2175 = vld [vmem:[#allocation3 + $0x50] sm:$0xff]
        %v2176 = vld [vmem:[#allocation3 + $0x58] sm:$0xff]
        %s2177 = scalar_lea.vmem %s5, 192
        %v2178 = vld [vmem:[%s2177] sm:$0xff]
        %v2179 = vld [vmem:[%s2177 + $0x8] sm:$0xff]
        %v2180 = vld [vmem:[%s2177 + $0x10] sm:$0xff]
        %v2181 = vld [vmem:[%s2177 + $0x18] sm:$0xff]
        %v2182 = vld [vmem:[%s2177 + $0x20] sm:$0xff]
        %v2183 = vld [vmem:[%s2177 + $0x28] sm:$0xff]
        %v2184 = vld [vmem:[%s2177 + $0x30] sm:$0xff]
        %v2185 = vld [vmem:[%s2177 + $0x38] sm:$0xff]
        %2187 = vset.pattern.permute.xlu0 0
        %2188 = vperm.xlu0 %2187, %v2178
        %v2189 = vpop.permute.xlu0 %2188
        %2192 = vset.pattern.permute.xlu0 0
        %2193 = vperm.xlu0 %2192, %v2179
        %v2194 = vpop.permute.xlu0 %2193
        %2197 = vset.pattern.permute.xlu0 0
        %2198 = vperm.xlu0 %2197, %v2180
        %v2199 = vpop.permute.xlu0 %2198
        %2202 = vset.pattern.permute.xlu0 0
        %2203 = vperm.xlu0 %2202, %v2181
        %v2204 = vpop.permute.xlu0 %2203
        %2207 = vset.pattern.permute.xlu0 0
        %2208 = vperm.xlu0 %2207, %v2182
        %v2209 = vpop.permute.xlu0 %2208
        %2212 = vset.pattern.permute.xlu0 0
        %2213 = vperm.xlu0 %2212, %v2183
        %v2214 = vpop.permute.xlu0 %2213
        %2217 = vset.pattern.permute.xlu0 0
        %2218 = vperm.xlu0 %2217, %v2184
        %v2219 = vpop.permute.xlu0 %2218
        %2222 = vset.pattern.permute.xlu0 0
        %2223 = vperm.xlu0 %2222, %v2185
        %v2224 = vpop.permute.xlu0 %2223
        %v2227 = vsel %vm727, %v2157, 0
        %v2230 = vsel %vm727, %v2158, 0
        %v2233 = vsel %vm727, %v2159, 0
        %v2236 = vsel %vm727, %v2160, 0
        %v2239 = vsel %vm727, %v2161, 0
        %v2242 = vsel %vm727, %v2162, 0
        %v2245 = vsel %vm727, %v2163, 0
        %v2248 = vsel %vm727, %v2164, 0
        %2250 = vmatpush.msra.mxu0 0.0
        %2251 = vmatpush.msra.mxu0 0.0
        %2252 = vmatpush.msra.mxu0 0.0
        %2253 = vmatpush.msra.mxu0 0.0
        %2254 = vmatpush.msra.mxu0 %v2176
        %2255 = vmatpush.msra.mxu0 %v2175
        %2256 = vmatpush.msra.mxu0 %v2174
        %2257 = vmatpush.msra.mxu0 %v2173
        %2258 = vmatpush.msra.mxu0 %v2172
        %2259 = vmatpush.msra.mxu0 %v2171
        %2260 = vmatpush.msra.mxu0 %v2170
        %2261 = vmatpush.msra.mxu0 %v2169
        %2262 = vmatpush.msra.mxu0 %v2168
        %2263 = vmatpush.msra.mxu0 %v2167
        %2264 = vmatpush.msra.mxu0 %v2166
        %2265 = vmatpush.msra.mxu0 %v2165
        %2266 = vmatmul.f32.gmra.mxu0 %v2227
        %v2267 = vpop.f32.mrf.mxu0
        %v2268 = vadd.f32 %v2189, %v2267
        %2269 = vmatmul.f32.gmra.mxu0 %v2230
        %v2270 = vpop.f32.mrf.mxu0
        %v2271 = vadd.f32 %v2194, %v2270
        %2272 = vmatmul.f32.gmra.mxu0 %v2233
        %v2273 = vpop.f32.mrf.mxu0
        %v2274 = vadd.f32 %v2199, %v2273
        %2275 = vmatmul.f32.gmra.mxu0 %v2236
        %v2276 = vpop.f32.mrf.mxu0
        %v2277 = vadd.f32 %v2204, %v2276
        %2278 = vmatmul.f32.gmra.mxu0 %v2239
        %v2279 = vpop.f32.mrf.mxu0
        %v2280 = vadd.f32 %v2209, %v2279
        %2281 = vmatmul.f32.gmra.mxu0 %v2242
        %v2282 = vpop.f32.mrf.mxu0
        %v2283 = vadd.f32 %v2214, %v2282
        %2284 = vmatmul.f32.gmra.mxu0 %v2245
        %v2285 = vpop.f32.mrf.mxu0
        %v2286 = vadd.f32 %v2219, %v2285
        %2287 = vmatmul.f32.gmra.mxu0 %v2248
        %v2288 = vpop.f32.mrf.mxu0
        %v2289 = vadd.f32 %v2224, %v2288
        %2290 = vdwg.mxu0
        %v2291 = vtanh.pop %v2268
        %v2292 = vtanh.pop %v2271
        %v2293 = vtanh.pop %v2274
        %v2294 = vtanh.pop %v2277
        %v2295 = vxor.u32 %v2280, 2147483648
        %v2296 = vxor.u32 %v2283, 2147483648
        %v2297 = vxor.u32 %v2286, 2147483648
        %v2298 = vxor.u32 %v2289, 2147483648
        %v2299 = vmul.f32 %v2295, 1.442695
        %v2300 = vpow.pop %v2299
        %v2301 = vmul.f32 %v2296, 1.442695
        %v2302 = vpow.pop %v2301
        %v2303 = vmul.f32 %v2297, 1.442695
        %v2304 = vpow.pop %v2303
        %v2305 = vmul.f32 %v2298, 1.442695
        %v2306 = vpow.pop %v2305
        %v2307 = vadd.f32 %v2300, 1.0
        %v2308 = vadd.f32 %v2302, 1.0
        %v2309 = vadd.f32 %v2304, 1.0
        %v2310 = vadd.f32 %v2306, 1.0
        %v2311 = vrcp.pop %v2307
        %v2312 = vmul.f32 %v2307, %v2311
        %v2313 = vsub.f32 1.0, %v2312
        %v2314 = vmul.f32 %v2311, %v2313
        %v2315 = vadd.f32 %v2311, %v2314
        %vm2316 = vweird.f32 %v2307
        %vm2317 = vweird.f32 %v2311
        %vm2318 = vmor %vm2316, %vm2317
        %v2319 = vsel %vm2318, %v2311, %v2315
        %v2320 = vand.u32 2147483647, %v2307
        %vm2321 = vcmp.eq.f32.partialorder %v2320, 8.507059e+37
        %v2322 = vand.u32 %v2307, 2147483648
        %v2323 = vor.u32 1.1754944e-38, %v2322
        %v2324 = vsel %vm2321, %v2323, %v2319
        %v2325 = vmul.f32 1.0, %v2324
        %v2326 = vrcp.pop %v2308
        %v2327 = vmul.f32 %v2308, %v2326
        %v2328 = vsub.f32 1.0, %v2327
        %v2329 = vmul.f32 %v2326, %v2328
        %v2330 = vadd.f32 %v2326, %v2329
        %vm2331 = vweird.f32 %v2308
        %vm2332 = vweird.f32 %v2326
        %vm2333 = vmor %vm2331, %vm2332
        %v2334 = vsel %vm2333, %v2326, %v2330
        %v2335 = vand.u32 2147483647, %v2308
        %vm2336 = vcmp.eq.f32.partialorder %v2335, 8.507059e+37
        %v2337 = vand.u32 %v2308, 2147483648
        %v2338 = vor.u32 1.1754944e-38, %v2337
        %v2339 = vsel %vm2336, %v2338, %v2334
        %v2340 = vmul.f32 1.0, %v2339
        %v2341 = vrcp.pop %v2309
        %v2342 = vmul.f32 %v2309, %v2341
        %v2343 = vsub.f32 1.0, %v2342
        %v2344 = vmul.f32 %v2341, %v2343
        %v2345 = vadd.f32 %v2341, %v2344
        %vm2346 = vweird.f32 %v2309
        %vm2347 = vweird.f32 %v2341
        %vm2348 = vmor %vm2346, %vm2347
        %v2349 = vsel %vm2348, %v2341, %v2345
        %v2350 = vand.u32 2147483647, %v2309
        %vm2351 = vcmp.eq.f32.partialorder %v2350, 8.507059e+37
        %v2352 = vand.u32 %v2309, 2147483648
        %v2353 = vor.u32 1.1754944e-38, %v2352
        %v2354 = vsel %vm2351, %v2353, %v2349
        %v2355 = vmul.f32 1.0, %v2354
        %v2356 = vrcp.pop %v2310
        %v2357 = vmul.f32 %v2310, %v2356
        %v2358 = vsub.f32 1.0, %v2357
        %v2359 = vmul.f32 %v2356, %v2358
        %v2360 = vadd.f32 %v2356, %v2359
        %vm2361 = vweird.f32 %v2310
        %vm2362 = vweird.f32 %v2356
        %vm2363 = vmor %vm2361, %vm2362
        %v2364 = vsel %vm2363, %v2356, %v2360
        %v2365 = vand.u32 2147483647, %v2310
        %vm2366 = vcmp.eq.f32.partialorder %v2365, 8.507059e+37
        %v2367 = vand.u32 %v2310, 2147483648
        %v2368 = vor.u32 1.1754944e-38, %v2367
        %v2369 = vsel %vm2366, %v2368, %v2364
        %v2370 = vmul.f32 1.0, %v2369
        %v2371 = vmul.f32 %v2291, %v2325
        %v2372 = vmul.f32 %v2292, %v2340
        %v2373 = vmul.f32 %v2293, %v2355
        %v2374 = vmul.f32 %v2294, %v2370
        %s2375 = scalar_lea.vmem %s6, 192
        %v2376 = vld [vmem:[%s2375 + $0x20] sm:$0xff]
        %v2377 = vld [vmem:[%s2375 + $0x28] sm:$0xff]
        %v2378 = vld [vmem:[%s2375 + $0x30] sm:$0xff]
        %v2379 = vld [vmem:[%s2375 + $0x38] sm:$0xff]
        %s2380 = scalar_lea.vmem %s7, 192
        %v2381 = vld [vmem:[%s2380 + $0x20] sm:$0xff]
        %v2382 = vld [vmem:[%s2380 + $0x28] sm:$0xff]
        %v2383 = vld [vmem:[%s2380 + $0x30] sm:$0xff]
        %v2384 = vld [vmem:[%s2380 + $0x38] sm:$0xff]
        %2386 = vset.pattern.permute.xlu0 0
        %2387 = vperm.xlu0 %2386, %v2381
        %v2388 = vpop.permute.xlu0 %2387
        %2391 = vset.pattern.permute.xlu0 0
        %2392 = vperm.xlu0 %2391, %v2382
        %v2393 = vpop.permute.xlu0 %2392
        %2396 = vset.pattern.permute.xlu0 0
        %2397 = vperm.xlu0 %2396, %v2383
        %v2398 = vpop.permute.xlu0 %2397
        %2401 = vset.pattern.permute.xlu0 0
        %2402 = vperm.xlu0 %2401, %v2384
        %v2403 = vpop.permute.xlu0 %2402
        %v2406 = vsel %vm933, %v2376, 0
        %v2409 = vsel %vm933, %v2377, 0
        %v2412 = vsel %vm933, %v2378, 0
        %v2415 = vsel %vm933, %v2379, 0
        %2417 = vmatpush.msra.mxu0 0.0
        %2418 = vmatpush.msra.mxu0 0.0
        %2419 = vmatpush.msra.mxu0 0.0
        %2420 = vmatpush.msra.mxu0 0.0
        %2421 = vmatpush.msra.mxu0 0.0
        %2422 = vmatpush.msra.mxu0 0.0
        %2423 = vmatpush.msra.mxu0 0.0
        %2424 = vmatpush.msra.mxu0 0.0
        %2425 = vmatpush.msra.mxu0 0.0
        %2426 = vmatpush.msra.mxu0 0.0
        %2427 = vmatpush.msra.mxu0 0.0
        %2428 = vmatpush.msra.mxu0 0.0
        %2429 = vmatpush.msra.mxu0 %v2374
        %2430 = vmatpush.msra.mxu0 %v2373
        %2431 = vmatpush.msra.mxu0 %v2372
        %2432 = vmatpush.msra.mxu0 %v2371
        %2433 = vmatmul.f32.gmra.mxu0 %v2406
        %v2434 = vpop.f32.mrf.mxu0
        %v2435 = vadd.f32 %v2388, %v2434
        %2436 = vmatmul.f32.gmra.mxu0 %v2409
        %v2437 = vpop.f32.mrf.mxu0
        %v2438 = vadd.f32 %v2393, %v2437
        %2439 = vmatmul.f32.gmra.mxu0 %v2412
        %v2440 = vpop.f32.mrf.mxu0
        %v2441 = vadd.f32 %v2398, %v2440
        %2442 = vmatmul.f32.gmra.mxu0 %v2415
        %v2443 = vpop.f32.mrf.mxu0
        %v2444 = vadd.f32 %v2403, %v2443
        %2445 = vdwg.mxu0
        %v2446 = vadd.f32 %v2031, %v2435
        %v2447 = vadd.f32 %v2032, %v2438
        %v2448 = vadd.f32 %v2033, %v2441
        %v2449 = vadd.f32 %v2034, %v2444
        %v2450 = vmul.f32 %v2446, %v483
        %v2451 = vmul.f32 %v2447, %v483
        %v2452 = vmul.f32 %v2448, %v483
        %v2453 = vmul.f32 %v2449, %v483
        %v2454 = vld [vmem:[%s8] sm:$0xf]
        %v2455 = vld [vmem:[%s9] sm:$0xf]
        %2457 = vset.pattern.permute.xlu0 0
        %2458 = vperm.xlu0 %2457, %v2455
        %v2459 = vpop.permute.xlu0 %2458
        %v2462 = vsel %vm933, %v2454, 0
        %2464 = vmatpush.msra.mxu0 0.0
        %2465 = vmatpush.msra.mxu0 0.0
        %2466 = vmatpush.msra.mxu0 0.0
        %2467 = vmatpush.msra.mxu0 0.0
        %2468 = vmatpush.msra.mxu0 0.0
        %2469 = vmatpush.msra.mxu0 0.0
        %2470 = vmatpush.msra.mxu0 0.0
        %2471 = vmatpush.msra.mxu0 0.0
        %2472 = vmatpush.msra.mxu0 0.0
        %2473 = vmatpush.msra.mxu0 0.0
        %2474 = vmatpush.msra.mxu0 0.0
        %2475 = vmatpush.msra.mxu0 0.0
        %2476 = vmatpush.msra.mxu0 %v2453
        %2477 = vmatpush.msra.mxu0 %v2452
        %2478 = vmatpush.msra.mxu0 %v2451
        %2479 = vmatpush.msra.mxu0 %v2450
        %2480 = vmatmul.f32.gmra.mxu0 %v2462
        %v2481 = vpop.f32.mrf.mxu0
        %v2482 = vadd.f32 %v2459, %v2481
        %2483 = vdwg.mxu0
        %v2484 = vmul.f32 %v2482, %v483
        %2485 = vst [vmem:[%s392] sm:$0x3] %v406
        %v2486 = vmul.f32 %v2482, 1.442695
        %v2487 = vpow.pop %v2486
        %v2488 = vmul.f32 %v2487, %v406
        %v2490 = vrot.slane %v2488, 2
        %v2492 = vadd.f32 %v2482, %v2490
        %v2493 = vmul.f32 %v2492, %v483
        %2494 = vst [vmem:[%s392 + $0x2] sm:$0x3] %v2493
        %v2496 = vrot.slane %v2484, 2
        %v2498 = vsel %vm449, %v2496, 0.0
        %v2499 = vrot.slane %v2498, 4
        %v2500 = vadd.f32 %v2498, %v2499
        %v2501 = vrot.slane %v2500, 2
        %v2502 = vadd.f32 %v2500, %v2501
        %v2503 = vrot.slane %v2502, 1
        %v2504 = vadd.f32 %v2502, %v2503
        %2505 = vst [vmem:[%s398] sm:$0x1] %v2504
        %s2506 = sand.u32 %s257, 1
        %s2507 = scalar_lea.sflag [#allocation5], %s2506
        %s2508 = sand.u32 %s257, 1
        %s2509 = smul.addr %s2508, 4
        %s2510 = scalar_lea.vmem [#allocation4], %s2509
        %s2511 = sand.u32 %s283, 1
        %s2512 = scalar_lea.sflag [#allocation7], %s2511
        %s2513 = sand.u32 %s283, 1
        %s2514 = scalar_lea.vmem [#allocation6], %s2513
        // Predicated region
        $region61: #{tpu_custom_call.1} parent=59 // pred_check
          %p2515 = pneg %p267
        $region62: #{tpu_custom_call.1} parent=59 // pred_check_branch
          %2517 = sbr.rel (%p2515) target = $region64
        $region63: #{tpu_custom_call.1} parent=59 // pred_region
          %2519 = vsyncadd %s2507, 0
          %s2520 = smul.addr %s29, 4
          %s2521 = scalar_lea.hbm %s10, %s2520
          %s2523 = sshll.u32 %s2510, 4
          %s2524 = int_to_ptr.vmem [resolvable:$true] %s2523
          %s2525 = sshll.u32 %s2521, 4
          %s2526 = int_to_ptr.hbm [resolvable:$true] %s2525
          %2528 = dma.vmem_to_hbm [thread:$0]  %s2524, 64, %s2526, %s2507
        $region64: #{tpu_custom_call.1} parent=59 // pred_fallthru
          _
        // Predicated region
        $region65: #{tpu_custom_call.1} parent=59 // pred_check
          %p2529 = pneg %p293
        $region66: #{tpu_custom_call.1} parent=59 // pred_check_branch
          %2531 = sbr.rel (%p2529) target = $region68
        $region67: #{tpu_custom_call.1} parent=59 // pred_region
          %2533 = vsyncadd %s2512, 0
          %s2534 = scalar_lea.hbm %s11, %s29
          %s2536 = sshll.u32 %s2514, 4
          %s2537 = int_to_ptr.vmem [resolvable:$true] %s2536
          %s2538 = sshll.u32 %s2534, 4
          %s2539 = int_to_ptr.hbm [resolvable:$true] %s2538
          %2541 = dma.vmem_to_hbm [thread:$0]  %s2537, 16, %s2539, %s2512
        $region68: #{tpu_custom_call.1} parent=59 // pred_fallthru
          _
      $region60: #{tpu_custom_call.1} parent=5 // pred_fallthru
        _
      %p2542 = scmp.le.s32.totalorder 2, %s24
      // Predicated region
      $region69: #{tpu_custom_call.1} parent=5 // pred_check
        %p2543 = pneg %p2542
      $region70: #{tpu_custom_call.1} parent=5 // pred_check_branch
        %2545 = sbr.rel (%p2543) target = $region72
      $region71: #{tpu_custom_call.1} parent=5 // pred_region
        %s2546 = ssub.s32 %s24, 2
        // Predicated region
        $region73: #{tpu_custom_call.1} parent=71 // pred_check
          %p2547 = pneg %p273
        $region74: #{tpu_custom_call.1} parent=71 // pred_check_branch
          %2549 = sbr.rel (%p2547) target = $region76
        $region75: #{tpu_custom_call.1} parent=71 // pred_region
          %s2550 = sand.u32 %s258, 1
          %s2551 = scalar_lea.sflag [#allocation5], %s2550
          %s2552 = sand.u32 %s258, 1
          %s2553 = smul.addr %s2552, 4
          %s2554 = scalar_lea.vmem [#allocation4], %s2553
          %2556 = dma.done %s2551, 64
        $region76: #{tpu_custom_call.1} parent=71 // pred_fallthru
          _
        // Predicated region
        $region77: #{tpu_custom_call.1} parent=71 // pred_check
          %p2557 = pneg %p299
        $region78: #{tpu_custom_call.1} parent=71 // pred_check_branch
          %2559 = sbr.rel (%p2557) target = $region80
        $region79: #{tpu_custom_call.1} parent=71 // pred_region
          %s2560 = sand.u32 %s284, 1
          %s2561 = scalar_lea.sflag [#allocation7], %s2560
          %s2562 = sand.u32 %s284, 1
          %s2563 = scalar_lea.vmem [#allocation6], %s2562
          %2565 = dma.done %s2561, 16
        $region80: #{tpu_custom_call.1} parent=71 // pred_fallthru
          _
      $region72: #{tpu_custom_call.1} parent=5 // pred_fallthru
        _
    $region6: #{tpu_custom_call.1} parent=1 // loop_footer
      %s28 = sadd.s32 1, %s24
    $region7: #{tpu_custom_call.1} parent=1 // loop_footer_branch
      %23 = sbr.rel target = $region3
    $region8: #{tpu_custom_call.1} parent=1 // loop_exit
      _
    %2566 = vsyncpa [#allocation5], 1
    %s2567 = scalar_lea.sflag [#allocation5], 1
    %2568 = vsyncpa %s2567, 1
    %2569 = vsyncpa [#allocation7], 1
    %s2570 = scalar_lea.sflag [#allocation7], 1
    %2571 = vsyncpa %s2570, 1

</llo_original>
